<compile_context>
chip_gen: v7x
topology: tpu7x:2x2x1
jax: 0.10.0
libtpu: 0.0.40
codegen_flags: <defaults>
</compile_context>

<pallas_src>
import functools
import math

import jax
import jax.numpy as jnp
from jax import lax
from jax.experimental import pallas as pl
from jax.experimental.pallas import tpu as pltpu


# ---------------------------------------------------------------------------
# Small helpers
# ---------------------------------------------------------------------------
def _nbytes(shape, dtype):
    return math.prod(shape) * jnp.dtype(dtype).itemsize


def _pick_row_tile(H, target=32):
    """Largest even divisor of H that is <= target."""
    best = 0
    for d in range(2, min(H, target) + 1, 2):
        if H % d == 0:
            best = d
    if best == 0:
        raise ValueError("H must be even for this kernel.")
    return best


def _mosaic_params(block_bytes, scratch_bytes):
    # Double-buffered blocks + scratch with headroom.  Floor at 32 MiB (>= any
    # generation's default scoped limit), cap below v7x's 64 MiB physical VMEM.
    need = 2 * block_bytes + scratch_bytes
    limit = int(min(max(2 * need, 32 * 1024 * 1024), 56 * 1024 * 1024))
    return pltpu.CompilerParams(
        dimension_semantics=("parallel", "parallel"),
        vmem_limit_bytes=limit,
    )


# ---------------------------------------------------------------------------
# In-kernel building blocks
# ---------------------------------------------------------------------------
def _conv3x3_accumulate(read_slab, w_ref, acc_ref, rows, W):
    """acc_ref[(rows*W, Cout), f32] = sum_{dy,dx} slab(dy)[:, dx:dx+W, :] @ w[dy, dx].

    read_slab(dy) returns a (rows, W+2, Cin) bf16 slab (rows dy..dy+rows-1 of a
    buffer that already carries the horizontal zero halo).  Nine bf16
    (rows*W, Cin)@(Cin, Cout) MXU matmuls, accumulated in an explicit f32 VMEM
    scratch (no implicit vreg spills for large tiles).
    """
    for dy in range(3):
        slab = read_slab(dy)                       # loaded once per dy
        cin = slab.shape[-1]
        partial = None
        for dx in range(3):
            xs = slab[:, dx:dx + W, :].reshape(rows * W, cin)
            d = jnp.dot(xs, w_ref[dy, dx], preferred_element_type=jnp.float32)
            partial = d if partial is None else partial + d
        if dy == 0:
            acc_ref[...] = partial
        else:
            acc_ref[...] += partial


def _store_output_tile(o_ref, interior_f32, TH, W, C):
    """o_ref block (1, TH, W+2, C): zero side columns + bf16 interior."""
    zcol = jnp.zeros((TH, 1, C), jnp.bfloat16)
    o_ref[0, :, 0:1, :] = zcol
    o_ref[0, :, W + 1:W + 2, :] = zcol
    o_ref[0, :, pl.ds(1, W), :] = interior_f32.reshape(TH, W, C).astype(jnp.bfloat16)


# ---------------------------------------------------------------------------
# Kernels
# ---------------------------------------------------------------------------
def _make_first_conv_kernel(TH, W, Cin, Cout, neg_slope):
    """3x3 conv + bias + LeakyReLU(neg_slope) on a TH-row tile."""

    def kernel(top_ref, cur_ref, bot_ref, w_ref, b_ref, o_ref, xbuf, acc):
        i = pl.program_id(1)
        T = pl.num_programs(1)

        # xbuf row k = image row i*TH - 1 + k  (k = 0 .. TH+1); zero outside image.
        xbuf[0:1, :, :] = top_ref[0, 1:2, :, :]
        xbuf[pl.ds(1, TH), :, :] = cur_ref[0]
        xbuf[TH + 1:TH + 2, :, :] = bot_ref[0, 0:1, :, :]

        @pl.when(i == 0)
        def _():
            xbuf[0:1, :, :] = jnp.zeros((1, W + 2, Cin), jnp.bfloat16)

        @pl.when(i == T - 1)
        def _():
            xbuf[TH + 1:TH + 2, :, :] = jnp.zeros((1, W + 2, Cin), jnp.bfloat16)

        _conv3x3_accumulate(lambda dy: xbuf[pl.ds(dy, TH), :, :], w_ref, acc, TH, W)
        y = acc[...] + b_ref[...]
        y = jnp.where(y >= 0, y, neg_slope * y)            # LeakyReLU
        _store_output_tile(o_ref, y, TH, W, Cout)

    return kernel


def _make_resblock_kernel(TH, W, C, res_scale):
    """Fused ResidualBlockNoBN: conv1 -> ReLU -> conv2 -> + identity on a TH-row tile."""

    def kernel(top_ref, cur_ref, bot_ref, w1_ref, b1_ref, w2_ref, b2_ref,
               o_ref, xbuf, hbuf, acc1, acc2):
        i = pl.program_id(1)
        T = pl.num_programs(1)

        # xbuf row k = image row i*TH - 2 + k  (k = 0 .. TH+3); zero outside image.
        xbuf[0:2, :, :] = top_ref[0]
        xbuf[pl.ds(2, TH), :, :] = cur_ref[0]
        xbuf[TH + 2:TH + 4, :, :] = bot_ref[0]

        @pl.when(i == 0)
        def _():
            xbuf[0:2, :, :] = jnp.zeros((2, W + 2, C), jnp.bfloat16)

        @pl.when(i == T - 1)
        def _():
            xbuf[TH + 2:TH + 4, :, :] = jnp.zeros((2, W + 2, C), jnp.bfloat16)

        # ---- conv1 + ReLU -> hbuf (stays in VMEM, never written to HBM) ----
        _conv3x3_accumulate(lambda dy: xbuf[pl.ds(dy, TH + 2), :, :],
                            w1_ref, acc1, TH + 2, W)
        h = jnp.maximum(acc1[...] + b1_ref[...], 0.0)
        zcol = jnp.zeros((TH + 2, 1, C), jnp.bfloat16)
        hbuf[:, 0:1, :] = zcol
        hbuf[:, W + 1:W + 2, :] = zcol
        hbuf[:, pl.ds(1, W), :] = h.reshape(TH + 2, W, C).astype(jnp.bfloat16)

        # Rows of h that fall outside the image are zero for conv2's 'same' padding.
        @pl.when(i == 0)
        def _():
            hbuf[0:1, :, :] = jnp.zeros((1, W + 2, C), jnp.bfloat16)

        @pl.when(i == T - 1)
        def _():
            hbuf[TH + 1:TH + 2, :, :] = jnp.zeros((1, W + 2, C), jnp.bfloat16)

        # ---- conv2 + residual add (f32) ----
        _conv3x3_accumulate(lambda dy: hbuf[pl.ds(dy, TH), :, :],
                            w2_ref, acc2, TH, W)
        identity = xbuf[pl.ds(2, TH), pl.ds(1, W), :].reshape(TH * W, C)
        out = identity.astype(jnp.float32) + (acc2[...] + b2_ref[...]) * res_scale
        _store_output_tile(o_ref, out, TH, W, C)

    return kernel


# ---------------------------------------------------------------------------
# BlockSpecs: overlapping vertical halo via clamped 2-row halo blocks
# ---------------------------------------------------------------------------
def _halo_specs(TH, H, W2, C):
    half = TH // 2
    nblk2 = H // 2
    top = pl.BlockSpec((1, 2, W2, C),
                       lambda n, i: (n, jnp.maximum(i * half - 1, 0), 0, 0))
    cur = pl.BlockSpec((1, TH, W2, C), lambda n, i: (n, i, 0, 0))
    bot = pl.BlockSpec((1, 2, W2, C),
                       lambda n, i: (n, jnp.minimum((i + 1) * half, nblk2 - 1), 0, 0))
    return top, cur, bot


# ---------------------------------------------------------------------------
# pallas_call builders (cached so repeated blocks reuse one compilation)
# ---------------------------------------------------------------------------
@functools.lru_cache(maxsize=None)
def _first_conv_call(N, H, W2, Cin, Cout, TH, neg_slope):
    W = W2 - 2
    T = H // TH
    top, cur, bot = _halo_specs(TH, H, W2, Cin)
    block_bytes = (2 * _nbytes((1, 2, W2, Cin), jnp.bfloat16)
                   + _nbytes((1, TH, W2, Cin), jnp.bfloat16)
                   + _nbytes((1, TH, W2, Cout), jnp.bfloat16)
                   + _nbytes((3, 3, Cin, Cout), jnp.bfloat16)
                   + _nbytes((1, Cout), jnp.float32))
    scratch_bytes = (_nbytes((TH + 2, W2, Cin), jnp.bfloat16)
                     + _nbytes((TH * W, Cout), jnp.float32))
    return pl.pallas_call(
        _make_first_conv_kernel(TH, W, Cin, Cout, neg_slope),
        out_shape=jax.ShapeDtypeStruct((N, H, W2, Cout), jnp.bfloat16),
        grid=(N, T),
        in_specs=[top, cur, bot,
                  pl.BlockSpec((3, 3, Cin, Cout), lambda n, i: (0, 0, 0, 0)),
                  pl.BlockSpec((1, Cout), lambda n, i: (0, 0))],
        out_specs=pl.BlockSpec((1, TH, W2, Cout), lambda n, i: (n, i, 0, 0)),
        scratch_shapes=[
            pltpu.VMEM((TH + 2, W2, Cin), jnp.bfloat16),   # halo'd input window
            pltpu.VMEM((TH * W, Cout), jnp.float32),       # f32 accumulator
        ],
        compiler_params=_mosaic_params(block_bytes, scratch_bytes),
    )


@functools.lru_cache(maxsize=None)
def _resblock_call(N, H, W2, C, TH, res_scale):
    W = W2 - 2
    T = H // TH
    top, cur, bot = _halo_specs(TH, H, W2, C)
    wspec = pl.BlockSpec((3, 3, C, C), lambda n, i: (0, 0, 0, 0))
    bspec = pl.BlockSpec((1, C), lambda n, i: (0, 0))
    block_bytes = (2 * _nbytes((1, 2, W2, C), jnp.bfloat16)
                   + 2 * _nbytes((1, TH, W2, C), jnp.bfloat16)
                   + 2 * _nbytes((3, 3, C, C), jnp.bfloat16)
                   + 2 * _nbytes((1, C), jnp.float32))
    scratch_bytes = (_nbytes((TH + 4, W2, C), jnp.bfloat16)
                     + _nbytes((TH + 2, W2, C), jnp.bfloat16)
                     + _nbytes(((TH + 2) * W, C), jnp.float32)
                     + _nbytes((TH * W, C), jnp.float32))
    return pl.pallas_call(
        _make_resblock_kernel(TH, W, C, res_scale),
        out_shape=jax.ShapeDtypeStruct((N, H, W2, C), jnp.bfloat16),
        grid=(N, T),
        in_specs=[top, cur, bot, wspec, bspec, wspec, bspec],
        out_specs=pl.BlockSpec((1, TH, W2, C), lambda n, i: (n, i, 0, 0)),
        scratch_shapes=[
            pltpu.VMEM((TH + 4, W2, C), jnp.bfloat16),     # halo'd input window
            pltpu.VMEM((TH + 2, W2, C), jnp.bfloat16),     # h = relu(conv1) (+halo)
            pltpu.VMEM(((TH + 2) * W, C), jnp.float32),    # conv1 accumulator
            pltpu.VMEM((TH * W, C), jnp.float32),          # conv2 accumulator
        ],
        compiler_params=_mosaic_params(block_bytes, scratch_bytes),
    )


def first_conv_leaky(x_padded, w, b, *, row_tile, neg_slope=0.1):
    N, H, W2, Cin = x_padded.shape
    Cout = w.shape[-1]
    call = _first_conv_call(N, H, W2, Cin, Cout, row_tile, float(neg_slope))
    return call(x_padded, x_padded, x_padded,
                w.astype(jnp.bfloat16),
                b.astype(jnp.float32).reshape(1, Cout))


def residual_block_fused(feat, w1, b1, w2, b2, *, row_tile, res_scale=1.0):
    N, H, W2, C = feat.shape
    call = _resblock_call(N, H, W2, C, row_tile, float(res_scale))
    return call(feat, feat, feat,
                w1.astype(jnp.bfloat16), b1.astype(jnp.float32).reshape(1, C),
                w2.astype(jnp.bfloat16), b2.astype(jnp.float32).reshape(1, C))


# ---------------------------------------------------------------------------
# Forward pass: ConvResidualBlocks
# ---------------------------------------------------------------------------
def conv_residual_blocks_forward(x_nhwc, params, *, res_scale=1.0, row_tile=None):
    N, H, W, Cin = x_nhwc.shape
    if row_tile is None:
        row_tile = _pick_row_tile(H)
    assert H % row_tile == 0 and row_tile % 2 == 0, "need even row_tile dividing H"

    # Only the tiny network input is padded with jnp.pad (horizontal halo only);
    # all intermediate feature maps keep the (N, H, W+2, C) bf16 layout whose
    # zero side columns are rewritten by every kernel, and the vertical halo is
    # fetched via the overlapping halo BlockSpecs.
    x_pad = jnp.pad(x_nhwc, ((0, 0), (0, 0), (1, 1), (0, 0))).astype(jnp.bfloat16)

    feat = first_conv_leaky(x_pad, params["first_w"], params["first_b"],
                            row_tile=row_tile)
    for (w1, b1, w2, b2) in params["blocks"]:
        feat = residual_block_fused(feat, w1, b1, w2, b2,
                                    row_tile=row_tile, res_scale=res_scale)
    return feat[:, :, 1:W + 1, :].astype(jnp.float32)


# ---------------------------------------------------------------------------
# Parameter construction (deterministic, synthetic; mirrors module __init__).
# ---------------------------------------------------------------------------
def init_params(key, num_in_ch, num_out_ch, num_block):
    def conv_params(k, cin, cout, scale):
        kw_key, kb_key = jax.random.split(k)
        fan_in = cin * 9
        bound = 1.0 / jnp.sqrt(fan_in)
        w = jax.random.uniform(kw_key, (3, 3, cin, cout), jnp.float32,
                               -bound, bound) * scale
        b = jax.random.uniform(kb_key, (cout,), jnp.float32, -bound, bound) * scale
        return w, b

    keys = jax.random.split(key, 1 + 2 * num_block)
    first_w, first_b = conv_params(keys[0], num_in_ch, num_out_ch, 1.0)
    blocks = []
    for i in range(num_block):
        # ResidualBlockNoBN uses default_init_weights(scale=0.1)
        w1, b1 = conv_params(keys[1 + 2 * i], num_out_ch, num_out_ch, 0.1)
        w2, b2 = conv_params(keys[2 + 2 * i], num_out_ch, num_out_ch, 0.1)
        blocks.append((w1, b1, w2, b2))
    return {"first_w": first_w, "first_b": first_b, "blocks": blocks}


# ---------------------------------------------------------------------------
# Pure-JAX f32 reference (correctness check)
# ---------------------------------------------------------------------------
def _ref_conv3x3(x, w, b):
    out = lax.conv_general_dilated(
        x, w, window_strides=(1, 1), padding="SAME",
        dimension_numbers=("NHWC", "HWIO", "NHWC"))
    return out + b.reshape(1, 1, 1, -1)


def _ref_forward(x, params, res_scale=1.0):
    feat = _ref_conv3x3(x, params["first_w"], params["first_b"])
    feat = jnp.where(feat >= 0, feat, 0.1 * feat)
    for (w1, b1, w2, b2) in params["blocks"]:
        h = jnp.maximum(_ref_conv3x3(feat, w1, b1), 0.0)
        out = _ref_conv3x3(h, w2, b2)
        feat = feat + out * res_scale
    return feat


if __name__ == "__main__":
    # Small deterministic example (PyTorch forward is NCHW; we use NHWC internally).
    N, C_IN, H, W = 2, 4, 16, 16
    C_OUT = 32
    NUM_BLOCK = 2
    ROW_TILE = 4   # 4 row tiles per image: exercises boundary and interior tiles

    key = jax.random.PRNGKey(0)
    k_x, k_p = jax.random.split(key)

    x_nchw = jax.random.normal(k_x, (N, C_IN, H, W), jnp.float32)
    x_nhwc = jnp.transpose(x_nchw, (0, 2, 3, 1))
    params = init_params(k_p, C_IN, C_OUT, NUM_BLOCK)

    out = conv_residual_blocks_forward(x_nhwc, params, row_tile=ROW_TILE)
    out = jax.block_until_ready(out)

    ref = _ref_forward(x_nhwc, params)
    assert out.shape == (N, H, W, C_OUT)
    # bf16 activation storage + bf16 MXU operands (f32 accumulation) => loosened tol.
    assert jnp.allclose(out, ref, atol=5e-2, rtol=5e-2), "mismatch vs reference"

    print("KERNEL_OK")
</pallas_src>

<mosaic_0001>
module attributes {stable_mosaic.version = 11 : i64} {
  func.func @kernel(%arg0: i32, %arg1: i32, %arg2: memref<1x2x18x4xbf16, #tpu.memory_space<vmem>>, %arg3: memref<1x4x18x4xbf16, #tpu.memory_space<vmem>>, %arg4: memref<1x2x18x4xbf16, #tpu.memory_space<vmem>>, %arg5: memref<3x3x4x32xbf16, #tpu.memory_space<vmem>>, %arg6: memref<1x32xf32, #tpu.memory_space<vmem>>, %arg7: memref<1x4x18x32xbf16, #tpu.memory_space<vmem>>, %arg8: memref<6x18x4xbf16, #tpu.memory_space<vmem>>, %arg9: memref<64x32xf32, #tpu.memory_space<vmem>>) attributes {dimension_semantics = [#tpu.dimension_semantics<parallel>, #tpu.dimension_semantics<parallel>], iteration_bounds = array<i64: 2, 4>, scalar_prefetch = 0 : i64, scratch_operands = 2 : i64, tpu.core_type = #tpu.core_type<tc>, window_params = [{transform_indices = @transform_0, window_bounds = array<i64: 1, 2, 18, 4>}, {transform_indices = @transform_1, window_bounds = array<i64: 1, 4, 18, 4>}, {transform_indices = @transform_2, window_bounds = array<i64: 1, 2, 18, 4>}, {pipeline_mode = #tpu.pipeline_mode<synchronous>, transform_indices = @transform_3, window_bounds = array<i64: 3, 3, 4, 32>}, {pipeline_mode = #tpu.pipeline_mode<synchronous>, transform_indices = @transform_4, window_bounds = array<i64: 1, 32>}, {transform_indices = @transform_5, window_bounds = array<i64: 1, 4, 18, 32>}]} {
    %c0 = arith.constant 0 : index
    %c1 = arith.constant 1 : index
    %c0_0 = arith.constant 0 : index
    %c0_1 = arith.constant 0 : index
    %0 = vector.load %arg2[%c0, %c1, %c0_0, %c0_1] : memref<1x2x18x4xbf16, #tpu.memory_space<vmem>>, vector<1x1x18x4xbf16>
    %1 = vector.shape_cast %0 : vector<1x1x18x4xbf16> to vector<1x18x4xbf16>
    %c0_2 = arith.constant 0 : index
    %c0_3 = arith.constant 0 : index
    %c0_4 = arith.constant 0 : index
    %2 = vector.load %arg8[%c0_2, %c0_3, %c0_4] : memref<6x18x4xbf16, #tpu.memory_space<vmem>>, vector<1x18x4xbf16>
    tpu.vector_store %arg8[%c0_2, %c0_3, %c0_4], %1 {strides = array<i32>} : memref<6x18x4xbf16, #tpu.memory_space<vmem>>, vector<1x18x4xbf16>,
    %c0_5 = arith.constant 0 : index
    %c0_6 = arith.constant 0 : index
    %c0_7 = arith.constant 0 : index
    %c0_8 = arith.constant 0 : index
    %3 = vector.load %arg3[%c0_5, %c0_6, %c0_7, %c0_8] : memref<1x4x18x4xbf16, #tpu.memory_space<vmem>>, vector<1x4x18x4xbf16>
    %4 = vector.shape_cast %3 : vector<1x4x18x4xbf16> to vector<4x18x4xbf16>
    %c1_9 = arith.constant 1 : index
    %c0_10 = arith.constant 0 : index
    %c0_11 = arith.constant 0 : index
    %5 = vector.load %arg8[%c1_9, %c0_10, %c0_11] : memref<6x18x4xbf16, #tpu.memory_space<vmem>>, vector<4x18x4xbf16>
    tpu.vector_store %arg8[%c1_9, %c0_10, %c0_11], %4 {strides = array<i32>} : memref<6x18x4xbf16, #tpu.memory_space<vmem>>, vector<4x18x4xbf16>,
    %c0_12 = arith.constant 0 : index
    %c0_13 = arith.constant 0 : index
    %c0_14 = arith.constant 0 : index
    %c0_15 = arith.constant 0 : index
    %6 = vector.load %arg4[%c0_12, %c0_13, %c0_14, %c0_15] : memref<1x2x18x4xbf16, #tpu.memory_space<vmem>>, vector<1x1x18x4xbf16>
    %7 = vector.shape_cast %6 : vector<1x1x18x4xbf16> to vector<1x18x4xbf16>
    %c5 = arith.constant 5 : index
    %c0_16 = arith.constant 0 : index
    %c0_17 = arith.constant 0 : index
    %8 = vector.load %arg8[%c5, %c0_16, %c0_17] : memref<6x18x4xbf16, #tpu.memory_space<vmem>>, vector<1x18x4xbf16>
    tpu.vector_store %arg8[%c5, %c0_16, %c0_17], %7 {strides = array<i32>} : memref<6x18x4xbf16, #tpu.memory_space<vmem>>, vector<1x18x4xbf16>,
    %c0_i32 = arith.constant 0 : i32
    %9 = arith.cmpi eq, %arg1, %c0_i32 : i32
    %10 = arith.extui %9 : i1 to i32
    %c0_i32_18 = arith.constant 0 : i32
    %11 = arith.cmpi ne, %10, %c0_i32_18 : i32
    scf.if %11 {
      %cst_100 = arith.constant 0.000000e+00 : bf16
      %97 = vector.broadcast %cst_100 : bf16 to vector<1x18x4xbf16>
      %c0_101 = arith.constant 0 : index
      %c0_102 = arith.constant 0 : index
      %c0_103 = arith.constant 0 : index
      %98 = vector.load %arg8[%c0_101, %c0_102, %c0_103] : memref<6x18x4xbf16, #tpu.memory_space<vmem>>, vector<1x18x4xbf16>
      tpu.vector_store %arg8[%c0_101, %c0_102, %c0_103], %97 {strides = array<i32>} : memref<6x18x4xbf16, #tpu.memory_space<vmem>>, vector<1x18x4xbf16>,
    } else {
    }
    %c3_i32 = arith.constant 3 : i32
    %12 = arith.cmpi eq, %arg1, %c3_i32 : i32
    %13 = arith.extui %12 : i1 to i32
    %c0_i32_19 = arith.constant 0 : i32
    %14 = arith.cmpi ne, %13, %c0_i32_19 : i32
    scf.if %14 {
      %cst_100 = arith.constant 0.000000e+00 : bf16
      %97 = vector.broadcast %cst_100 : bf16 to vector<1x18x4xbf16>
      %c5_101 = arith.constant 5 : index
      %c0_102 = arith.constant 0 : index
      %c0_103 = arith.constant 0 : index
      %98 = vector.load %arg8[%c5_101, %c0_102, %c0_103] : memref<6x18x4xbf16, #tpu.memory_space<vmem>>, vector<1x18x4xbf16>
      tpu.vector_store %arg8[%c5_101, %c0_102, %c0_103], %97 {strides = array<i32>} : memref<6x18x4xbf16, #tpu.memory_space<vmem>>, vector<1x18x4xbf16>,
    } else {
    }
    %c0_20 = arith.constant 0 : index
    %c0_21 = arith.constant 0 : index
    %c0_22 = arith.constant 0 : index
    %15 = vector.load %arg8[%c0_20, %c0_21, %c0_22] : memref<6x18x4xbf16, #tpu.memory_space<vmem>>, vector<4x18x4xbf16>
    %16 = vector.extract_strided_slice %15 {offsets = [0, 0, 0], sizes = [4, 16, 4], strides = [1, 1, 1]} : vector<4x18x4xbf16> to vector<4x16x4xbf16>
    %17 = vector.shape_cast %16 : vector<4x16x4xbf16> to vector<64x4xbf16>
    %c0_23 = arith.constant 0 : index
    %c0_24 = arith.constant 0 : index
    %c0_25 = arith.constant 0 : index
    %c0_26 = arith.constant 0 : index
    %18 = vector.load %arg5[%c0_23, %c0_24, %c0_25, %c0_26] : memref<3x3x4x32xbf16, #tpu.memory_space<vmem>>, vector<1x1x4x32xbf16>
    %19 = vector.shape_cast %18 : vector<1x1x4x32xbf16> to vector<4x32xbf16>
    %cst = arith.constant dense<0.000000e+00> : vector<64x32xf32>
    %20 = tpu.matmul %17, %19, %cst {dimension_numbers = #tpu.dot_dimension_numbers<[1], [0], [0], [1], [0, 0, 1, 1], [], []>} : vector<64x4xbf16>, vector<4x32xbf16>, vector<64x32xf32> -> vector<64x32xf32>
    %21 = vector.extract_strided_slice %15 {offsets = [0, 1, 0], sizes = [4, 16, 4], strides = [1, 1, 1]} : vector<4x18x4xbf16> to vector<4x16x4xbf16>
    %22 = vector.shape_cast %21 : vector<4x16x4xbf16> to vector<64x4xbf16>
    %c0_27 = arith.constant 0 : index
    %c1_28 = arith.constant 1 : index
    %c0_29 = arith.constant 0 : index
    %c0_30 = arith.constant 0 : index
    %23 = vector.load %arg5[%c0_27, %c1_28, %c0_29, %c0_30] : memref<3x3x4x32xbf16, #tpu.memory_space<vmem>>, vector<1x1x4x32xbf16>
    %24 = vector.shape_cast %23 : vector<1x1x4x32xbf16> to vector<4x32xbf16>
    %cst_31 = arith.constant dense<0.000000e+00> : vector<64x32xf32>
    %25 = tpu.matmul %22, %24, %cst_31 {dimension_numbers = #tpu.dot_dimension_numbers<[1], [0], [0], [1], [0, 0, 1, 1], [], []>} : vector<64x4xbf16>, vector<4x32xbf16>, vector<64x32xf32> -> vector<64x32xf32>
    %26 = arith.addf %20, %25 : vector<64x32xf32>
    %27 = vector.extract_strided_slice %15 {offsets = [0, 2, 0], sizes = [4, 16, 4], strides = [1, 1, 1]} : vector<4x18x4xbf16> to vector<4x16x4xbf16>
    %28 = vector.shape_cast %27 : vector<4x16x4xbf16> to vector<64x4xbf16>
    %c0_32 = arith.constant 0 : index
    %c2 = arith.constant 2 : index
    %c0_33 = arith.constant 0 : index
    %c0_34 = arith.constant 0 : index
    %29 = vector.load %arg5[%c0_32, %c2, %c0_33, %c0_34] : memref<3x3x4x32xbf16, #tpu.memory_space<vmem>>, vector<1x1x4x32xbf16>
    %30 = vector.shape_cast %29 : vector<1x1x4x32xbf16> to vector<4x32xbf16>
    %cst_35 = arith.constant dense<0.000000e+00> : vector<64x32xf32>
    %31 = tpu.matmul %28, %30, %cst_35 {dimension_numbers = #tpu.dot_dimension_numbers<[1], [0], [0], [1], [0, 0, 1, 1], [], []>} : vector<64x4xbf16>, vector<4x32xbf16>, vector<64x32xf32> -> vector<64x32xf32>
    %32 = arith.addf %26, %31 : vector<64x32xf32>
    %c0_36 = arith.constant 0 : index
    %c0_37 = arith.constant 0 : index
    %33 = vector.load %arg9[%c0_36, %c0_37] : memref<64x32xf32, #tpu.memory_space<vmem>>, vector<64x32xf32>
    tpu.vector_store %arg9[%c0_36, %c0_37], %32 {strides = array<i32>} : memref<64x32xf32, #tpu.memory_space<vmem>>, vector<64x32xf32>,
    %c1_38 = arith.constant 1 : index
    %c0_39 = arith.constant 0 : index
    %c0_40 = arith.constant 0 : index
    %34 = vector.load %arg8[%c1_38, %c0_39, %c0_40] : memref<6x18x4xbf16, #tpu.memory_space<vmem>>, vector<4x18x4xbf16>
    %35 = vector.extract_strided_slice %34 {offsets = [0, 0, 0], sizes = [4, 16, 4], strides = [1, 1, 1]} : vector<4x18x4xbf16> to vector<4x16x4xbf16>
    %36 = vector.shape_cast %35 : vector<4x16x4xbf16> to vector<64x4xbf16>
    %c1_41 = arith.constant 1 : index
    %c0_42 = arith.constant 0 : index
    %c0_43 = arith.constant 0 : index
    %c0_44 = arith.constant 0 : index
    %37 = vector.load %arg5[%c1_41, %c0_42, %c0_43, %c0_44] : memref<3x3x4x32xbf16, #tpu.memory_space<vmem>>, vector<1x1x4x32xbf16>
    %38 = vector.shape_cast %37 : vector<1x1x4x32xbf16> to vector<4x32xbf16>
    %cst_45 = arith.constant dense<0.000000e+00> : vector<64x32xf32>
    %39 = tpu.matmul %36, %38, %cst_45 {dimension_numbers = #tpu.dot_dimension_numbers<[1], [0], [0], [1], [0, 0, 1, 1], [], []>} : vector<64x4xbf16>, vector<4x32xbf16>, vector<64x32xf32> -> vector<64x32xf32>
    %40 = vector.extract_strided_slice %34 {offsets = [0, 1, 0], sizes = [4, 16, 4], strides = [1, 1, 1]} : vector<4x18x4xbf16> to vector<4x16x4xbf16>
    %41 = vector.shape_cast %40 : vector<4x16x4xbf16> to vector<64x4xbf16>
    %c1_46 = arith.constant 1 : index
    %c1_47 = arith.constant 1 : index
    %c0_48 = arith.constant 0 : index
    %c0_49 = arith.constant 0 : index
    %42 = vector.load %arg5[%c1_46, %c1_47, %c0_48, %c0_49] : memref<3x3x4x32xbf16, #tpu.memory_space<vmem>>, vector<1x1x4x32xbf16>
    %43 = vector.shape_cast %42 : vector<1x1x4x32xbf16> to vector<4x32xbf16>
    %cst_50 = arith.constant dense<0.000000e+00> : vector<64x32xf32>
    %44 = tpu.matmul %41, %43, %cst_50 {dimension_numbers = #tpu.dot_dimension_numbers<[1], [0], [0], [1], [0, 0, 1, 1], [], []>} : vector<64x4xbf16>, vector<4x32xbf16>, vector<64x32xf32> -> vector<64x32xf32>
    %45 = arith.addf %39, %44 : vector<64x32xf32>
    %46 = vector.extract_strided_slice %34 {offsets = [0, 2, 0], sizes = [4, 16, 4], strides = [1, 1, 1]} : vector<4x18x4xbf16> to vector<4x16x4xbf16>
    %47 = vector.shape_cast %46 : vector<4x16x4xbf16> to vector<64x4xbf16>
    %c1_51 = arith.constant 1 : index
    %c2_52 = arith.constant 2 : index
    %c0_53 = arith.constant 0 : index
    %c0_54 = arith.constant 0 : index
    %48 = vector.load %arg5[%c1_51, %c2_52, %c0_53, %c0_54] : memref<3x3x4x32xbf16, #tpu.memory_space<vmem>>, vector<1x1x4x32xbf16>
    %49 = vector.shape_cast %48 : vector<1x1x4x32xbf16> to vector<4x32xbf16>
    %cst_55 = arith.constant dense<0.000000e+00> : vector<64x32xf32>
    %50 = tpu.matmul %47, %49, %cst_55 {dimension_numbers = #tpu.dot_dimension_numbers<[1], [0], [0], [1], [0, 0, 1, 1], [], []>} : vector<64x4xbf16>, vector<4x32xbf16>, vector<64x32xf32> -> vector<64x32xf32>
    %51 = arith.addf %45, %50 : vector<64x32xf32>
    %c0_56 = arith.constant 0 : index
    %c0_57 = arith.constant 0 : index
    %52 = vector.load %arg9[%c0_56, %c0_57] : memref<64x32xf32, #tpu.memory_space<vmem>>, vector<64x32xf32>
    %53 = arith.addf %52, %51 : vector<64x32xf32>
    %c0_58 = arith.constant 0 : index
    %c0_59 = arith.constant 0 : index
    %54 = vector.load %arg9[%c0_58, %c0_59] : memref<64x32xf32, #tpu.memory_space<vmem>>, vector<64x32xf32>
    tpu.vector_store %arg9[%c0_58, %c0_59], %53 {strides = array<i32>} : memref<64x32xf32, #tpu.memory_space<vmem>>, vector<64x32xf32>,
    %c2_60 = arith.constant 2 : index
    %c0_61 = arith.constant 0 : index
    %c0_62 = arith.constant 0 : index
    %55 = vector.load %arg8[%c2_60, %c0_61, %c0_62] : memref<6x18x4xbf16, #tpu.memory_space<vmem>>, vector<4x18x4xbf16>
    %56 = vector.extract_strided_slice %55 {offsets = [0, 0, 0], sizes = [4, 16, 4], strides = [1, 1, 1]} : vector<4x18x4xbf16> to vector<4x16x4xbf16>
    %57 = vector.shape_cast %56 : vector<4x16x4xbf16> to vector<64x4xbf16>
    %c2_63 = arith.constant 2 : index
    %c0_64 = arith.constant 0 : index
    %c0_65 = arith.constant 0 : index
    %c0_66 = arith.constant 0 : index
    %58 = vector.load %arg5[%c2_63, %c0_64, %c0_65, %c0_66] : memref<3x3x4x32xbf16, #tpu.memory_space<vmem>>, vector<1x1x4x32xbf16>
    %59 = vector.shape_cast %58 : vector<1x1x4x32xbf16> to vector<4x32xbf16>
    %cst_67 = arith.constant dense<0.000000e+00> : vector<64x32xf32>
    %60 = tpu.matmul %57, %59, %cst_67 {dimension_numbers = #tpu.dot_dimension_numbers<[1], [0], [0], [1], [0, 0, 1, 1], [], []>} : vector<64x4xbf16>, vector<4x32xbf16>, vector<64x32xf32> -> vector<64x32xf32>
    %61 = vector.extract_strided_slice %55 {offsets = [0, 1, 0], sizes = [4, 16, 4], strides = [1, 1, 1]} : vector<4x18x4xbf16> to vector<4x16x4xbf16>
    %62 = vector.shape_cast %61 : vector<4x16x4xbf16> to vector<64x4xbf16>
    %c2_68 = arith.constant 2 : index
    %c1_69 = arith.constant 1 : index
    %c0_70 = arith.constant 0 : index
    %c0_71 = arith.constant 0 : index
    %63 = vector.load %arg5[%c2_68, %c1_69, %c0_70, %c0_71] : memref<3x3x4x32xbf16, #tpu.memory_space<vmem>>, vector<1x1x4x32xbf16>
    %64 = vector.shape_cast %63 : vector<1x1x4x32xbf16> to vector<4x32xbf16>
    %cst_72 = arith.constant dense<0.000000e+00> : vector<64x32xf32>
    %65 = tpu.matmul %62, %64, %cst_72 {dimension_numbers = #tpu.dot_dimension_numbers<[1], [0], [0], [1], [0, 0, 1, 1], [], []>} : vector<64x4xbf16>, vector<4x32xbf16>, vector<64x32xf32> -> vector<64x32xf32>
    %66 = arith.addf %60, %65 : vector<64x32xf32>
    %67 = vector.extract_strided_slice %55 {offsets = [0, 2, 0], sizes = [4, 16, 4], strides = [1, 1, 1]} : vector<4x18x4xbf16> to vector<4x16x4xbf16>
    %68 = vector.shape_cast %67 : vector<4x16x4xbf16> to vector<64x4xbf16>
    %c2_73 = arith.constant 2 : index
    %c2_74 = arith.constant 2 : index
    %c0_75 = arith.constant 0 : index
    %c0_76 = arith.constant 0 : index
    %69 = vector.load %arg5[%c2_73, %c2_74, %c0_75, %c0_76] : memref<3x3x4x32xbf16, #tpu.memory_space<vmem>>, vector<1x1x4x32xbf16>
    %70 = vector.shape_cast %69 : vector<1x1x4x32xbf16> to vector<4x32xbf16>
    %cst_77 = arith.constant dense<0.000000e+00> : vector<64x32xf32>
    %71 = tpu.matmul %68, %70, %cst_77 {dimension_numbers = #tpu.dot_dimension_numbers<[1], [0], [0], [1], [0, 0, 1, 1], [], []>} : vector<64x4xbf16>, vector<4x32xbf16>, vector<64x32xf32> -> vector<64x32xf32>
    %72 = arith.addf %66, %71 : vector<64x32xf32>
    %c0_78 = arith.constant 0 : index
    %c0_79 = arith.constant 0 : index
    %73 = vector.load %arg9[%c0_78, %c0_79] : memref<64x32xf32, #tpu.memory_space<vmem>>, vector<64x32xf32>
    %74 = arith.addf %73, %72 : vector<64x32xf32>
    %c0_80 = arith.constant 0 : index
    %c0_81 = arith.constant 0 : index
    %75 = vector.load %arg9[%c0_80, %c0_81] : memref<64x32xf32, #tpu.memory_space<vmem>>, vector<64x32xf32>
    tpu.vector_store %arg9[%c0_80, %c0_81], %74 {strides = array<i32>} : memref<64x32xf32, #tpu.memory_space<vmem>>, vector<64x32xf32>,
    %c0_82 = arith.constant 0 : index
    %c0_83 = arith.constant 0 : index
    %76 = vector.load %arg9[%c0_82, %c0_83] : memref<64x32xf32, #tpu.memory_space<vmem>>, vector<64x32xf32>
    %c0_84 = arith.constant 0 : index
    %c0_85 = arith.constant 0 : index
    %77 = vector.load %arg6[%c0_84, %c0_85] : memref<1x32xf32, #tpu.memory_space<vmem>>, vector<1x32xf32>
    %78 = vector.broadcast %77 : vector<1x32xf32> to vector<64x32xf32>
    %79 = arith.addf %76, %78 : vector<64x32xf32>
    %cst_86 = arith.constant 0.000000e+00 : f32
    %80 = vector.broadcast %cst_86 : f32 to vector<64x32xf32>
    %81 = arith.cmpf oge, %79, %80 : vector<64x32xf32>
    %cst_87 = arith.constant 1.000000e-01 : f32
    %82 = vector.broadcast %cst_87 : f32 to vector<64x32xf32>
    %83 = arith.mulf %82, %79 : vector<64x32xf32>
    %84 = arith.select %81, %79, %83 : vector<64x32xi1>, vector<64x32xf32>
    %cst_88 = arith.constant 0.000000e+00 : bf16
    %85 = vector.broadcast %cst_88 : bf16 to vector<4x1x32xbf16>
    %c0_89 = arith.constant 0 : index
    %c0_90 = arith.constant 0 : index
    %c0_91 = arith.constant 0 : index
    %c0_92 = arith.constant 0 : index
    %86 = vector.load %arg7[%c0_89, %c0_90, %c0_91, %c0_92] : memref<1x4x18x32xbf16, #tpu.memory_space<vmem>>, vector<1x4x1x32xbf16>
    %87 = vector.shape_cast %86 : vector<1x4x1x32xbf16> to vector<4x1x32xbf16>
    %88 = vector.shape_cast %85 : vector<4x1x32xbf16> to vector<1x4x1x32xbf16>
    tpu.vector_store %arg7[%c0_89, %c0_90, %c0_91, %c0_92], %88 {strides = array<i32>} : memref<1x4x18x32xbf16, #tpu.memory_space<vmem>>, vector<1x4x1x32xbf16>,
    %c0_93 = arith.constant 0 : index
    %c0_94 = arith.constant 0 : index
    %c17 = arith.constant 17 : index
    %c0_95 = arith.constant 0 : index
    %89 = vector.load %arg7[%c0_93, %c0_94, %c17, %c0_95] : memref<1x4x18x32xbf16, #tpu.memory_space<vmem>>, vector<1x4x1x32xbf16>
    %90 = vector.shape_cast %89 : vector<1x4x1x32xbf16> to vector<4x1x32xbf16>
    %91 = vector.shape_cast %85 : vector<4x1x32xbf16> to vector<1x4x1x32xbf16>
    tpu.vector_store %arg7[%c0_93, %c0_94, %c17, %c0_95], %91 {strides = array<i32>} : memref<1x4x18x32xbf16, #tpu.memory_space<vmem>>, vector<1x4x1x32xbf16>,
    %92 = vector.shape_cast %84 : vector<64x32xf32> to vector<4x16x32xf32>
    %93 = arith.truncf %92 : vector<4x16x32xf32> to vector<4x16x32xbf16>
    %c0_96 = arith.constant 0 : index
    %c0_97 = arith.constant 0 : index
    %c1_98 = arith.constant 1 : index
    %c0_99 = arith.constant 0 : index
    %94 = vector.load %arg7[%c0_96, %c0_97, %c1_98, %c0_99] : memref<1x4x18x32xbf16, #tpu.memory_space<vmem>>, vector<1x4x16x32xbf16>
    %95 = vector.shape_cast %94 : vector<1x4x16x32xbf16> to vector<4x16x32xbf16>
    %96 = vector.shape_cast %93 : vector<4x16x32xbf16> to vector<1x4x16x32xbf16>
    tpu.vector_store %arg7[%c0_96, %c0_97, %c1_98, %c0_99], %96 {strides = array<i32>} : memref<1x4x18x32xbf16, #tpu.memory_space<vmem>>, vector<1x4x16x32xbf16>,
    return
  }
  func.func @transform_0(%arg0: i32, %arg1: i32) -> (i32, i32, i32, i32) {
    %c2_i32 = arith.constant 2 : i32
    %0 = arith.muli %arg1, %c2_i32 : i32
    %c1_i32 = arith.constant 1 : i32
    %1 = arith.subi %0, %c1_i32 : i32
    %c0_i32 = arith.constant 0 : i32
    %2 = arith.maxsi %1, %c0_i32 : i32
    %c0_i32_0 = arith.constant 0 : i32
    %c0_i32_1 = arith.constant 0 : i32
    %c0_i32_2 = arith.constant 0 : i32
    return %arg0, %2, %c0_i32_0, %c0_i32_1 : i32, i32, i32, i32
  }
  func.func @transform_1(%arg0: i32, %arg1: i32) -> (i32, i32, i32, i32) {
    %c0_i32 = arith.constant 0 : i32
    %c0_i32_0 = arith.constant 0 : i32
    %c0_i32_1 = arith.constant 0 : i32
    return %arg0, %arg1, %c0_i32, %c0_i32_0 : i32, i32, i32, i32
  }
  func.func @transform_2(%arg0: i32, %arg1: i32) -> (i32, i32, i32, i32) {
    %c1_i32 = arith.constant 1 : i32
    %0 = arith.addi %arg1, %c1_i32 : i32
    %c2_i32 = arith.constant 2 : i32
    %1 = arith.muli %0, %c2_i32 : i32
    %c7_i32 = arith.constant 7 : i32
    %2 = arith.minsi %1, %c7_i32 : i32
    %c0_i32 = arith.constant 0 : i32
    %c0_i32_0 = arith.constant 0 : i32
    %c0_i32_1 = arith.constant 0 : i32
    return %arg0, %2, %c0_i32, %c0_i32_0 : i32, i32, i32, i32
  }
  func.func @transform_3(%arg0: i32, %arg1: i32) -> (i32, i32, i32, i32) {
    %c0_i32 = arith.constant 0 : i32
    %c0_i32_0 = arith.constant 0 : i32
    %c0_i32_1 = arith.constant 0 : i32
    %c0_i32_2 = arith.constant 0 : i32
    %c0_i32_3 = arith.constant 0 : i32
    return %c0_i32, %c0_i32_0, %c0_i32_1, %c0_i32_2 : i32, i32, i32, i32
  }
  func.func @transform_4(%arg0: i32, %arg1: i32) -> (i32, i32) {
    %c0_i32 = arith.constant 0 : i32
    %c0_i32_0 = arith.constant 0 : i32
    %c0_i32_1 = arith.constant 0 : i32
    return %c0_i32, %c0_i32_0 : i32, i32
  }
  func.func @transform_5(%arg0: i32, %arg1: i32) -> (i32, i32, i32, i32) {
    %c0_i32 = arith.constant 0 : i32
    %c0_i32_0 = arith.constant 0 : i32
    %c0_i32_1 = arith.constant 0 : i32
    return %arg0, %arg1, %c0_i32, %c0_i32_0 : i32, i32, i32, i32
  }
}

</mosaic_0001>

<llo_original>
// kernel: tpu_custom_call.1
$region0: #{tpu_custom_call.1}
  #allocation0 [shape = 'u32[]', space=smem, size = 0x4, offset = 0x4, fixed_abs, tag = 'smem constant byte address 0x4 - core index']
  #allocation1 [shape = 'u32[144,128]{1,0:T(1,128)}', space=vmem, size = 0x12000, scoped, tag = 'internal scratch']
  #allocation2 [shape = 'bf16[6,18,4]{2,1,0:T(8,128)(2,1)}', space=vmem, size = 0x9000, scoped, tag = 'scratch operand']
  #allocation3 [shape = 'f32[64,32]{1,0:T(8,128)}', space=vmem, size = 0x8000, scoped, tag = 'scratch operand']
  %s0 = inlined_call_operand.vmem [shape: bf16[2,16,18,4], index: 0, kind: input, shape index: {}]
  %s1 = inlined_call_operand.vmem [shape: bf16[2,16,18,4], index: 1, kind: input, shape index: {}]
  %s2 = inlined_call_operand.vmem [shape: bf16[2,16,18,4], index: 2, kind: input, shape index: {}]
  %s3 = inlined_call_operand.vmem [shape: bf16[3,3,4,32], index: 3, kind: input, shape index: {}]
  %s4 = inlined_call_operand.vmem [shape: f32[1,32], index: 4, kind: input, shape index: {}]
  %s5 = inlined_call_operand.vmem [shape: bf16[2,16,18,32], index: 5, kind: output, shape index: {}]
  %s6 = sld [smem:[#allocation0]]
  $region61: #{tpu_custom_call.1} parent=0
    _
  %s8 = ssub.s32 1, %s6
  %s9 = scalar_select 0, %s8, %s6
  loop: start=0, step=1, limit=10
  $region2: #{tpu_custom_call.1} parent=0 // loop_pre_header
    _
  $region3: #{tpu_custom_call.1} parent=0 // loop_header
    %s11 = sphi 0, %s15
    %p12 = scmp.ge.s32.totalorder %s11, 10
    %s18 = sphi 0, %s30
    %s19 = sphi 0, %s26
    %s20 = sphi 0, %s18
    %s21 = sphi 0, %s19
    %s22 = sphi 0, %s20
    %s23 = sphi 0, %s21
    %s43 = sphi 0, %s45
    %s46 = sphi 0, %s43
    %s47 = sphi 0, %s46
    %s63 = sphi 0, %s47
    %s71 = sphi 0, %s73
    %s74 = sphi 0, %s71
    %s75 = sphi 0, %s74
    %s91 = sphi 0, %s75
    %s107 = sphi 0, %s109
    %s110 = sphi 0, %s107
    %s111 = sphi 0, %s110
    %s127 = sphi 0, %s111
    %s131 = sphi 0, %s131
    %s133 = sphi 0, %s131
    %s134 = sphi 0, %s133
    %s148 = sphi 0, %s134
    %s152 = sphi 0, %s152
    %s154 = sphi 0, %s152
    %s155 = sphi 0, %s154
    %s169 = sphi 0, %s155
    %s177 = sphi 0, %s179
    %s180 = sphi 0, %s177
    %s181 = sphi 0, %s180
    %s197 = sphi 0, %s181
  $region4: #{tpu_custom_call.1} parent=0 // loop_header_branch
    %14 = sbr.rel (%p12) target = $region8
  $region5: #{tpu_custom_call.1} parent=0 // loop_body
    %s16 = ssub.s32 %s11, 1
    %s17 = ssub.s32 %s11, 2
    %s24 = sadd.s32 1, %s19
    %p25 = scmp.ge.s32.totalorder %s24, 4
    %s26 = scalar_select %p25, 0, %s24
    %s27 = sadd.s32 1, %s18
    %s28 = scalar_select %p25, %s27, %s18
    %p29 = scmp.ge.s32.totalorder %s28, 2
    %s30 = scalar_select %p29, 0, %s28
    %s31 = smul.u32 %s19, 2
    %s32 = ssub.s32 %s31, 1
    %p33 = scmp.gt.s32.totalorder %s32, 0
    %s34 = scalar_select %p33, %s32, 0
    %s35 = smul.u32 %s26, 2
    %s36 = ssub.s32 %s35, 1
    %p37 = scmp.gt.s32.totalorder %s36, 0
    %s38 = scalar_select %p37, %s36, 0
    %s39 = ssub.s32 %s18, %s30
    %s40 = ssub.s32 %s34, %s38
    %s41 = sor.u32 %s39, %s40
    %p42 = scmp.eq.s32.totalorder %s41, 0
    %s44 = sadd.s32 %s43, 1
    %s45 = scalar_select %p42, %s43, %s44
    %p48 = pneg %p42
    %p49 = scmp.eq.s32.totalorder %s11, 7
    %p50 = por %p48, %p49
    %p51 = scmp.ne.s32.totalorder %s43, %s46
    %p52 = scmp.eq.s32.totalorder %s11, 0
    %p53 = por %p51, %p52
    %p54 = scmp.ne.s32.totalorder %s43, %s46
    %p55 = scmp.eq.s32.totalorder %s16, 7
    %p56 = por %p54, %p55
    %p57 = scmp.ne.s32.totalorder %s46, %s47
    %p58 = scmp.eq.s32.totalorder %s16, 0
    %p59 = por %p57, %p58
    %p60 = scmp.ne.s32.totalorder %s46, %s47
    %p61 = scmp.eq.s32.totalorder %s17, 7
    %p62 = por %p60, %p61
    %p64 = scmp.ne.s32.totalorder %s47, %s63
    %p65 = scmp.eq.s32.totalorder %s17, 0
    %p66 = por %p64, %p65
    %s67 = ssub.s32 %s18, %s30
    %s68 = ssub.s32 %s19, %s26
    %s69 = sor.u32 %s67, %s68
    %p70 = scmp.eq.s32.totalorder %s69, 0
    %s72 = sadd.s32 %s71, 1
    %s73 = scalar_select %p70, %s71, %s72
    %p76 = pneg %p70
    %p77 = scmp.eq.s32.totalorder %s11, 7
    %p78 = por %p76, %p77
    %p79 = scmp.ne.s32.totalorder %s71, %s74
    %p80 = scmp.eq.s32.totalorder %s11, 0
    %p81 = por %p79, %p80
    %p82 = scmp.ne.s32.totalorder %s71, %s74
    %p83 = scmp.eq.s32.totalorder %s16, 7
    %p84 = por %p82, %p83
    %p85 = scmp.ne.s32.totalorder %s74, %s75
    %p86 = scmp.eq.s32.totalorder %s16, 0
    %p87 = por %p85, %p86
    %p88 = scmp.ne.s32.totalorder %s74, %s75
    %p89 = scmp.eq.s32.totalorder %s17, 7
    %p90 = por %p88, %p89
    %p92 = scmp.ne.s32.totalorder %s75, %s91
    %p93 = scmp.eq.s32.totalorder %s17, 0
    %p94 = por %p92, %p93
    %s95 = sadd.s32 %s19, 1
    %s96 = smul.u32 %s95, 2
    %p97 = scmp.lt.s32.totalorder %s96, 7
    %s98 = scalar_select %p97, %s96, 7
    %s99 = sadd.s32 %s26, 1
    %s100 = smul.u32 %s99, 2
    %p101 = scmp.lt.s32.totalorder %s100, 7
    %s102 = scalar_select %p101, %s100, 7
    %s103 = ssub.s32 %s18, %s30
    %s104 = ssub.s32 %s98, %s102
    %s105 = sor.u32 %s103, %s104
    %p106 = scmp.eq.s32.totalorder %s105, 0
    %s108 = sadd.s32 %s107, 1
    %s109 = scalar_select %p106, %s107, %s108
    %p112 = pneg %p106
    %p113 = scmp.eq.s32.totalorder %s11, 7
    %p114 = por %p112, %p113
    %p115 = scmp.ne.s32.totalorder %s107, %s110
    %p116 = scmp.eq.s32.totalorder %s11, 0
    %p117 = por %p115, %p116
    %p118 = scmp.ne.s32.totalorder %s107, %s110
    %p119 = scmp.eq.s32.totalorder %s16, 7
    %p120 = por %p118, %p119
    %p121 = scmp.ne.s32.totalorder %s110, %s111
    %p122 = scmp.eq.s32.totalorder %s16, 0
    %p123 = por %p121, %p122
    %p124 = scmp.ne.s32.totalorder %s110, %s111
    %p125 = scmp.eq.s32.totalorder %s17, 7
    %p126 = por %p124, %p125
    %p128 = scmp.ne.s32.totalorder %s111, %s127
    %p129 = scmp.eq.s32.totalorder %s17, 0
    %p130 = por %p128, %p129
    %s132 = sadd.s32 %s131, 1
    %p135 = scmp.eq.s32.totalorder %s11, 7
    %p136 = scmp.ne.s32.totalorder %s131, %s133
    %p137 = scmp.eq.s32.totalorder %s11, 0
    %p138 = por %p136, %p137
    %p139 = scmp.ne.s32.totalorder %s131, %s133
    %p140 = scmp.eq.s32.totalorder %s16, 7
    %p141 = por %p139, %p140
    %p142 = scmp.ne.s32.totalorder %s133, %s134
    %p143 = scmp.eq.s32.totalorder %s16, 0
    %p144 = por %p142, %p143
    %p145 = scmp.ne.s32.totalorder %s133, %s134
    %p146 = scmp.eq.s32.totalorder %s17, 7
    %p147 = por %p145, %p146
    %p149 = scmp.ne.s32.totalorder %s134, %s148
    %p150 = scmp.eq.s32.totalorder %s17, 0
    %p151 = por %p149, %p150
    %s153 = sadd.s32 %s152, 1
    %p156 = scmp.eq.s32.totalorder %s11, 7
    %p157 = scmp.ne.s32.totalorder %s152, %s154
    %p158 = scmp.eq.s32.totalorder %s11, 0
    %p159 = por %p157, %p158
    %p160 = scmp.ne.s32.totalorder %s152, %s154
    %p161 = scmp.eq.s32.totalorder %s16, 7
    %p162 = por %p160, %p161
    %p163 = scmp.ne.s32.totalorder %s154, %s155
    %p164 = scmp.eq.s32.totalorder %s16, 0
    %p165 = por %p163, %p164
    %p166 = scmp.ne.s32.totalorder %s154, %s155
    %p167 = scmp.eq.s32.totalorder %s17, 7
    %p168 = por %p166, %p167
    %p170 = scmp.ne.s32.totalorder %s155, %s169
    %p171 = scmp.eq.s32.totalorder %s17, 0
    %p172 = por %p170, %p171
    %s173 = ssub.s32 %s18, %s30
    %s174 = ssub.s32 %s19, %s26
    %s175 = sor.u32 %s173, %s174
    %p176 = scmp.eq.s32.totalorder %s175, 0
    %s178 = sadd.s32 %s177, 1
    %s179 = scalar_select %p176, %s177, %s178
    %p182 = pneg %p176
    %p183 = scmp.eq.s32.totalorder %s11, 7
    %p184 = por %p182, %p183
    %p185 = scmp.ne.s32.totalorder %s177, %s180
    %p186 = scmp.eq.s32.totalorder %s11, 0
    %p187 = por %p185, %p186
    %p188 = scmp.ne.s32.totalorder %s177, %s180
    %p189 = scmp.eq.s32.totalorder %s16, 7
    %p190 = por %p188, %p189
    %p191 = scmp.ne.s32.totalorder %s180, %s181
    %p192 = scmp.eq.s32.totalorder %s16, 0
    %p193 = por %p191, %p192
    %p194 = scmp.ne.s32.totalorder %s180, %s181
    %p195 = scmp.eq.s32.totalorder %s17, 7
    %p196 = por %p194, %p195
    %p198 = scmp.ne.s32.totalorder %s181, %s197
    %p199 = scmp.eq.s32.totalorder %s17, 0
    %p200 = por %p198, %p199
    %p201 = scmp.le.s32.totalorder 1, %s11
    %p202 = scmp.lt.s32.totalorder %s11, 9
    %p203 = pnand %p201, %p202
    %p204 = pneg %p203
    // Predicated region
    $region9: #{tpu_custom_call.1} parent=5 // pred_check
      _
    $region10: #{tpu_custom_call.1} parent=5 // pred_check_branch
      %206 = sbr.rel (%p203) target = $region12
    $region11: #{tpu_custom_call.1} parent=5 // pred_region
      %s207 = ssub.s32 %s11, 1
      // Predicated region
      $region13: #{tpu_custom_call.1} parent=11 // pred_check
        %p208 = pneg %p144
      $region14: #{tpu_custom_call.1} parent=11 // pred_check_branch
        %210 = sbr.rel (%p208) target = $region16
      $region15: #{tpu_custom_call.1} parent=11 // pred_region
        _
      $region16: #{tpu_custom_call.1} parent=11 // pred_fallthru
        _
      // Predicated region
      $region17: #{tpu_custom_call.1} parent=11 // pred_check
        %p211 = pneg %p165
      $region18: #{tpu_custom_call.1} parent=11 // pred_check_branch
        %213 = sbr.rel (%p211) target = $region20
      $region19: #{tpu_custom_call.1} parent=11 // pred_region
        _
      $region20: #{tpu_custom_call.1} parent=11 // pred_fallthru
        _
    $region12: #{tpu_custom_call.1} parent=5 // pred_fallthru
      _
    %p214 = scmp.lt.s32.totalorder %s11, 8
    // Predicated region
    $region21: #{tpu_custom_call.1} parent=5 // pred_check
      %p215 = pneg %p214
    $region22: #{tpu_custom_call.1} parent=5 // pred_check_branch
      %217 = sbr.rel (%p215) target = $region24
    $region23: #{tpu_custom_call.1} parent=5 // pred_region
      // Predicated region
      $region25: #{tpu_custom_call.1} parent=23 // pred_check
        %p218 = pneg %p53
      $region26: #{tpu_custom_call.1} parent=23 // pred_check_branch
        %220 = sbr.rel (%p218) target = $region28
      $region27: #{tpu_custom_call.1} parent=23 // pred_region
        %s221 = smul.u32 %s19, 2
        %s222 = ssub.s32 %s221, 1
        %p223 = scmp.gt.s32.totalorder %s222, 0
        %s224 = scalar_select %p223, %s222, 0
        %s225 = smul.u32 2, %s224
        %p226 = scmp.lt.s32.totalorder %s18, 1
        %s227 = scalar_select %p226, %s18, 1
        %p228 = scmp.lt.s32.totalorder %s225, 15
        %s229 = scalar_select %p228, %s225, 15
        %s230 = smul.addr %s229, 3
        %s231 = smul.addr %s227, 48
        %s232 = sadd.s32 %s230, %s231
        %s233 = smul.addr %s232, 4
        %s234 = scalar_lea.vmem %s0, %s233
        %s235 = smul.u32 %s19, 2
        %s236 = ssub.s32 %s235, 1
        %p237 = scmp.gt.s32.totalorder %s236, 0
        %s238 = scalar_select %p237, %s236, 0
        %s239 = smul.u32 2, %s238
      $region28: #{tpu_custom_call.1} parent=23 // pred_fallthru
        _
      // Predicated region
      $region29: #{tpu_custom_call.1} parent=23 // pred_check
        %p240 = pneg %p81
      $region30: #{tpu_custom_call.1} parent=23 // pred_check_branch
        %242 = sbr.rel (%p240) target = $region32
      $region31: #{tpu_custom_call.1} parent=23 // pred_region
        %s243 = smul.u32 4, %s19
        %p244 = scmp.lt.s32.totalorder %s18, 1
        %s245 = scalar_select %p244, %s18, 1
        %p246 = scmp.lt.s32.totalorder %s243, 15
        %s247 = scalar_select %p246, %s243, 15
        %s248 = smul.addr %s247, 3
        %s249 = smul.addr %s245, 48
        %s250 = sadd.s32 %s248, %s249
        %s251 = smul.addr %s250, 4
        %s252 = scalar_lea.vmem %s1, %s251
        %s253 = smul.u32 4, %s19
      $region32: #{tpu_custom_call.1} parent=23 // pred_fallthru
        _
      // Predicated region
      $region33: #{tpu_custom_call.1} parent=23 // pred_check
        %p254 = pneg %p117
      $region34: #{tpu_custom_call.1} parent=23 // pred_check_branch
        %256 = sbr.rel (%p254) target = $region36
      $region35: #{tpu_custom_call.1} parent=23 // pred_region
        %s257 = sadd.s32 %s19, 1
        %s258 = smul.u32 %s257, 2
        %p259 = scmp.lt.s32.totalorder %s258, 7
        %s260 = scalar_select %p259, %s258, 7
        %s261 = smul.u32 2, %s260
        %p262 = scmp.lt.s32.totalorder %s18, 1
        %s263 = scalar_select %p262, %s18, 1
        %p264 = scmp.lt.s32.totalorder %s261, 15
        %s265 = scalar_select %p264, %s261, 15
        %s266 = smul.addr %s265, 3
        %s267 = smul.addr %s263, 48
        %s268 = sadd.s32 %s266, %s267
        %s269 = smul.addr %s268, 4
        %s270 = scalar_lea.vmem %s2, %s269
        %s271 = sadd.s32 %s19, 1
        %s272 = smul.u32 %s271, 2
        %p273 = scmp.lt.s32.totalorder %s272, 7
        %s274 = scalar_select %p273, %s272, 7
        %s275 = smul.u32 2, %s274
      $region36: #{tpu_custom_call.1} parent=23 // pred_fallthru
        _
    $region24: #{tpu_custom_call.1} parent=5 // pred_fallthru
      _
    %p276 = scmp.le.s32.totalorder 1, %s11
    %p277 = scmp.lt.s32.totalorder %s11, 9
    %p278 = pnand %p276, %p277
    %p279 = pneg %p278
    // Predicated region
    $region37: #{tpu_custom_call.1} parent=5 // pred_check
      _
    $region38: #{tpu_custom_call.1} parent=5 // pred_check_branch
      %281 = sbr.rel (%p278) target = $region40
    $region39: #{tpu_custom_call.1} parent=5 // pred_region
      %s282 = ssub.s32 %s11, 1
      %s283 = smul.u32 %s21, 2
      %s284 = ssub.s32 %s283, 1
      %p285 = scmp.gt.s32.totalorder %s284, 0
      %s286 = scalar_select %p285, %s284, 0
      %s287 = smul.u32 2, %s286
      %p288 = scmp.lt.s32.totalorder %s20, 1
      %s289 = scalar_select %p288, %s20, 1
      %p290 = scmp.lt.s32.totalorder %s287, 15
      %s291 = scalar_select %p290, %s287, 15
      %s292 = smul.addr %s291, 3
      %s293 = smul.addr %s289, 48
      %s294 = sadd.s32 %s292, %s293
      %s295 = smul.addr %s294, 4
      %s296 = scalar_lea.vmem %s0, %s295
      %p297 = pneg %p59
      %p298 = pneg %p56
      %s299 = smul.u32 4, %s21
      %p300 = scmp.lt.s32.totalorder %s20, 1
      %s301 = scalar_select %p300, %s20, 1
      %p302 = scmp.lt.s32.totalorder %s299, 15
      %s303 = scalar_select %p302, %s299, 15
      %s304 = smul.addr %s303, 3
      %s305 = smul.addr %s301, 48
      %s306 = sadd.s32 %s304, %s305
      %s307 = smul.addr %s306, 4
      %s308 = scalar_lea.vmem %s1, %s307
      %p309 = pneg %p87
      %p310 = pneg %p84
      %s311 = sadd.s32 %s21, 1
      %s312 = smul.u32 %s311, 2
      %p313 = scmp.lt.s32.totalorder %s312, 7
      %s314 = scalar_select %p313, %s312, 7
      %s315 = smul.u32 2, %s314
      %p316 = scmp.lt.s32.totalorder %s20, 1
      %s317 = scalar_select %p316, %s20, 1
      %p318 = scmp.lt.s32.totalorder %s315, 15
      %s319 = scalar_select %p318, %s315, 15
      %s320 = smul.addr %s319, 3
      %s321 = smul.addr %s317, 48
      %s322 = sadd.s32 %s320, %s321
      %s323 = smul.addr %s322, 4
      %s324 = scalar_lea.vmem %s2, %s323
      %p325 = pneg %p123
      %p326 = pneg %p120
      %p327 = pneg %p144
      %p328 = pneg %p141
      %p329 = pneg %p165
      %p330 = pneg %p162
      %p331 = pneg %p193
      %p332 = pneg %p190
      %s333 = smul.u32 4, %s21
      %p334 = scmp.lt.s32.totalorder %s20, 1
      %s335 = scalar_select %p334, %s20, 1
      %p336 = scmp.lt.s32.totalorder %s333, 15
      %s337 = scalar_select %p336, %s333, 15
      %s338 = smul.addr %s337, 3
      %s339 = smul.addr %s335, 48
      %s340 = sadd.s32 %s338, %s339
      %s341 = smul.addr %s340, 4
      %s342 = scalar_lea.vmem %s5, %s341
      %s343 = smul.u32 %s21, 2
      %s344 = ssub.s32 %s343, 1
      %p345 = scmp.gt.s32.totalorder %s344, 0
      %s346 = scalar_select %p345, %s344, 0
      %s347 = smul.u32 2, %s346
      %p348 = scmp.lt.s32.totalorder %s20, 1
      %s349 = scalar_select %p348, %s20, 1
      %p350 = scmp.lt.s32.totalorder %s347, 15
      %s351 = scalar_select %p350, %s347, 15
      %s352 = smul.addr %s351, 3
      %s353 = smul.addr %s349, 48
      %s354 = sadd.s32 %s352, %s353
      %s355 = smul.addr %s354, 4
      %s356 = scalar_lea.vmem %s0, %s355
      %s357 = smul.u32 %s21, 2
      %s358 = ssub.s32 %s357, 1
      %p359 = scmp.gt.s32.totalorder %s358, 0
      %s360 = scalar_select %p359, %s358, 0
      %s361 = smul.u32 2, %s360
      %s362 = smul.u32 4, %s21
      %p363 = scmp.lt.s32.totalorder %s20, 1
      %s364 = scalar_select %p363, %s20, 1
      %p365 = scmp.lt.s32.totalorder %s362, 15
      %s366 = scalar_select %p365, %s362, 15
      %s367 = smul.addr %s366, 3
      %s368 = smul.addr %s364, 48
      %s369 = sadd.s32 %s367, %s368
      %s370 = smul.addr %s369, 4
      %s371 = scalar_lea.vmem %s1, %s370
      %s372 = smul.u32 4, %s21
      %s373 = sadd.s32 %s21, 1
      %s374 = smul.u32 %s373, 2
      %p375 = scmp.lt.s32.totalorder %s374, 7
      %s376 = scalar_select %p375, %s374, 7
      %s377 = smul.u32 2, %s376
      %p378 = scmp.lt.s32.totalorder %s20, 1
      %s379 = scalar_select %p378, %s20, 1
      %p380 = scmp.lt.s32.totalorder %s377, 15
      %s381 = scalar_select %p380, %s377, 15
      %s382 = smul.addr %s381, 3
      %s383 = smul.addr %s379, 48
      %s384 = sadd.s32 %s382, %s383
      %s385 = smul.addr %s384, 4
      %s386 = scalar_lea.vmem %s2, %s385
      %s387 = sadd.s32 %s21, 1
      %s388 = smul.u32 %s387, 2
      %p389 = scmp.lt.s32.totalorder %s388, 7
      %s390 = scalar_select %p389, %s388, 7
      %s391 = smul.u32 2, %s390
      %s392 = smul.u32 4, %s21
      %p393 = scmp.lt.s32.totalorder %s20, 1
      %s394 = scalar_select %p393, %s20, 1
      %p395 = scmp.lt.s32.totalorder %s392, 15
      %s396 = scalar_select %p395, %s392, 15
      %s397 = smul.addr %s396, 3
      %s398 = smul.addr %s394, 48
      %s399 = sadd.s32 %s397, %s398
      %s400 = smul.addr %s399, 4
      %s401 = scalar_lea.vmem %s5, %s400
      %s402 = smul.u32 4, %s21
      %s404 = scalar_lea.vmem %s356, 12
      %v405 = vld [vmem:[%s404] sm:$0xf]
      %v406 = vld [vmem:[%s404 + $0x4] sm:$0xf]
      %v407 = vld [vmem:[%s404 + $0x8] sm:$0x1]
      %vm408 = vcmask 27648
      %409 = vst.msk [vmem:[#allocation2] sm:$0xf] %vm408, %v405
      %410 = vst.msk [vmem:[#allocation2 + $0x4] sm:$0xf] %vm408, %v406
      %vm411 = vcmask 24576
      %412 = vst.msk [vmem:[#allocation2 + $0x8] sm:$0x1] %vm411, %v407
      %v413 = vld [vmem:[%s371] sm:$0xf]
      %v414 = vld [vmem:[%s371 + $0x4] sm:$0xf]
      %v415 = vld [vmem:[%s371 + $0x8] sm:$0x1]
      %v416 = vld [vmem:[%s371 + $0xc] sm:$0xf]
      %v417 = vld [vmem:[%s371 + $0x10] sm:$0xf]
      %v418 = vld [vmem:[%s371 + $0x14] sm:$0x1]
      %v419 = vld [vmem:[%s371 + $0x18] sm:$0xf]
      %v420 = vld [vmem:[%s371 + $0x1c] sm:$0xf]
      %v421 = vld [vmem:[%s371 + $0x20] sm:$0x1]
      %v422 = vld [vmem:[%s371 + $0x24] sm:$0xf]
      %v423 = vld [vmem:[%s371 + $0x28] sm:$0xf]
      %v424 = vld [vmem:[%s371 + $0x2c] sm:$0x1]
      %s425 = scalar_lea.vmem [#allocation2], 12
      %426 = vst.msk [vmem:[%s425] sm:$0xf] %vm408, %v413
      %427 = vst.msk [vmem:[%s425 + $0x4] sm:$0xf] %vm408, %v414
      %428 = vst.msk [vmem:[%s425 + $0x8] sm:$0x1] %vm411, %v415
      %429 = vst.msk [vmem:[%s425 + $0xc] sm:$0xf] %vm408, %v416
      %430 = vst.msk [vmem:[%s425 + $0x10] sm:$0xf] %vm408, %v417
      %431 = vst.msk [vmem:[%s425 + $0x14] sm:$0x1] %vm411, %v418
      %432 = vst.msk [vmem:[%s425 + $0x18] sm:$0xf] %vm408, %v419
      %433 = vst.msk [vmem:[%s425 + $0x1c] sm:$0xf] %vm408, %v420
      %434 = vst.msk [vmem:[%s425 + $0x20] sm:$0x1] %vm411, %v421
      %435 = vst.msk [vmem:[%s425 + $0x24] sm:$0xf] %vm408, %v422
      %436 = vst.msk [vmem:[%s425 + $0x28] sm:$0xf] %vm408, %v423
      %437 = vst.msk [vmem:[%s425 + $0x2c] sm:$0x1] %vm411, %v424
      %v438 = vld [vmem:[%s386] sm:$0xf]
      %v439 = vld [vmem:[%s386 + $0x4] sm:$0xf]
      %v440 = vld [vmem:[%s386 + $0x8] sm:$0x1]
      %s441 = scalar_lea.vmem [#allocation2], 60
      %442 = vst.msk [vmem:[%s441] sm:$0xf] %vm408, %v438
      %443 = vst.msk [vmem:[%s441 + $0x4] sm:$0xf] %vm408, %v439
      %444 = vst.msk [vmem:[%s441 + $0x8] sm:$0x1] %vm411, %v440
      %p445 = scmp.eq.s32.totalorder %s21, 0
      // Predicated region
      $region41: #{tpu_custom_call.1} parent=39 // pred_check
        %p446 = pneg %p445
      $region42: #{tpu_custom_call.1} parent=39 // pred_check_branch
        %448 = sbr.rel (%p446) target = $region44
      $region43: #{tpu_custom_call.1} parent=39 // pred_region
        %449 = vst.msk [vmem:[#allocation2] sm:$0xf] %vm408, 0
        %450 = vst.msk [vmem:[#allocation2 + $0x4] sm:$0xf] %vm408, 0
        %451 = vst.msk [vmem:[#allocation2 + $0x8] sm:$0x1] %vm411, 0
      $region44: #{tpu_custom_call.1} parent=39 // pred_fallthru
        _
      %p452 = scmp.eq.s32.totalorder %s21, 3
      // Predicated region
      $region45: #{tpu_custom_call.1} parent=39 // pred_check
        %p453 = pneg %p452
      $region46: #{tpu_custom_call.1} parent=39 // pred_check_branch
        %455 = sbr.rel (%p453) target = $region48
      $region47: #{tpu_custom_call.1} parent=39 // pred_region
        %456 = vst.msk [vmem:[%s441] sm:$0xf] %vm408, 0
        %457 = vst.msk [vmem:[%s441 + $0x4] sm:$0xf] %vm408, 0
        %458 = vst.msk [vmem:[%s441 + $0x8] sm:$0x1] %vm411, 0
      $region48: #{tpu_custom_call.1} parent=39 // pred_fallthru
        _
      %v459 = vld [vmem:[#allocation2] sm:$0xf]
      %v460 = vld [vmem:[#allocation2 + $0x4] sm:$0xf]
      %v461 = vld [vmem:[#allocation2 + $0x8] sm:$0x1]
      %v462 = vld [vmem:[#allocation2 + $0xc] sm:$0xf]
      %v463 = vld [vmem:[#allocation2 + $0x10] sm:$0xf]
      %v464 = vld [vmem:[#allocation2 + $0x14] sm:$0x1]
      %v465 = vld [vmem:[#allocation2 + $0x18] sm:$0xf]
      %v466 = vld [vmem:[#allocation2 + $0x1c] sm:$0xf]
      %v467 = vld [vmem:[#allocation2 + $0x20] sm:$0x1]
      %v468 = vld [vmem:[#allocation2 + $0x24] sm:$0xf]
      %v469 = vld [vmem:[#allocation2 + $0x28] sm:$0xf]
      %v470 = vld [vmem:[#allocation2 + $0x2c] sm:$0x1]
      %v471 = vld [vmem:[%s3] sm:$0x3]
      %vm472 = vsmask.f32 3328
      %vm473 = vsmask.f32 7440
      %vm474 = vmor %vm472, %vm473
      %v476 = vshrl.u32 %v459, 16
      %v478 = vrot.slane %v476, 4
      %v479 = vshll.u32 %v459, 16
      %v481 = vrot.slane %v479, 5
      %v482 = vor.u32 %v478, %v481
      %v483 = vrot.slane %v482, 4
      %v485 = vshll.u32 %v460, 16
      %v487 = vrot.slane %v485, 5
      %v488 = vsel %vm474, %v483, %v487
      %v489 = vshrl.u32 %v460, 16
      %v491 = vrot.slane %v489, 4
      %v492 = vor.u32 %v491, %v487
      %v493 = vrot.slane %v492, 4
      %v495 = vshll.u32 %v461, 16
      %v497 = vrot.slane %v495, 5
      %v498 = vsel %vm474, %v493, %v497
      %v500 = vshrl.u32 %v462, 16
      %v502 = vrot.slane %v500, 4
      %v503 = vshll.u32 %v462, 16
      %v505 = vrot.slane %v503, 5
      %v506 = vor.u32 %v502, %v505
      %v507 = vrot.slane %v506, 4
      %v509 = vshll.u32 %v463, 16
      %v511 = vrot.slane %v509, 5
      %v512 = vsel %vm474, %v507, %v511
      %v513 = vshrl.u32 %v463, 16
      %v515 = vrot.slane %v513, 4
      %v516 = vor.u32 %v515, %v511
      %v517 = vrot.slane %v516, 4
      %v519 = vshll.u32 %v464, 16
      %v521 = vrot.slane %v519, 5
      %v522 = vsel %vm474, %v517, %v521
      %v524 = vshrl.u32 %v465, 16
      %v526 = vrot.slane %v524, 4
      %v527 = vshll.u32 %v465, 16
      %v529 = vrot.slane %v527, 5
      %v530 = vor.u32 %v526, %v529
      %v531 = vrot.slane %v530, 4
      %v533 = vshll.u32 %v466, 16
      %v535 = vrot.slane %v533, 5
      %v536 = vsel %vm474, %v531, %v535
      %v537 = vshrl.u32 %v466, 16
      %v539 = vrot.slane %v537, 4
      %v540 = vor.u32 %v539, %v535
      %v541 = vrot.slane %v540, 4
      %v543 = vshll.u32 %v467, 16
      %v545 = vrot.slane %v543, 5
      %v546 = vsel %vm474, %v541, %v545
      %v548 = vshrl.u32 %v468, 16
      %v550 = vrot.slane %v548, 4
      %v551 = vshll.u32 %v468, 16
      %v553 = vrot.slane %v551, 5
      %v554 = vor.u32 %v550, %v553
      %v555 = vrot.slane %v554, 4
      %v557 = vshll.u32 %v469, 16
      %v559 = vrot.slane %v557, 5
      %v560 = vsel %vm474, %v555, %v559
      %v561 = vshrl.u32 %v469, 16
      %v563 = vrot.slane %v561, 4
      %v564 = vor.u32 %v563, %v559
      %v565 = vrot.slane %v564, 4
      %v567 = vshll.u32 %v470, 16
      %v569 = vrot.slane %v567, 5
      %v570 = vsel %vm474, %v565, %v569
      %s571 = scalar_lea.vmem %s3, 2
      %v572 = vld [vmem:[%s571] sm:$0x3]
      %v573 = vunpack.c.l.b16 %v488
      %v574 = vunpack.c.l.b16 %v498
      %v575 = vunpack.c.l.b16 %v512
      %v576 = vunpack.c.l.b16 %v522
      %v577 = vunpack.c.l.b16 %v536
      %v578 = vunpack.c.l.b16 %v546
      %v579 = vunpack.c.l.b16 %v560
      %v580 = vunpack.c.l.b16 %v570
      %v581 = vpack.c.b16 %v574, %v573
      %v582 = vpack.c.b16 %v576, %v575
      %v583 = vpack.c.b16 %v578, %v577
      %v584 = vpack.c.b16 %v580, %v579
      %vm585 = vcmask 31744
      %v587 = vsel %vm585, %v581, 0
      %v590 = vsel %vm585, %v582, 0
      %v593 = vsel %vm585, %v583, 0
      %v596 = vsel %vm585, %v584, 0
      %vm598 = vcmask 1041408
      %v600 = vsel %vm598, %v572, 0
      %602 = vmatprep.subr.bf16.mxu0 0
      %603 = vmatpush1.bf16.msra.mxu0 %v600
      %604 = vmatprep.subr.bf16.mxu0 0
      %605 = vmatpush1.bf16.msra.mxu0 0
      %606 = vmatprep.subr.bf16.mxu0 0
      %607 = vmatpush1.bf16.msra.mxu0 0
      %608 = vmatprep.subr.bf16.mxu0 0
      %609 = vmatpush1.bf16.msra.mxu0 0
      %610 = vmatprep.subr.bf16.mxu0 0
      %611 = vmatpush1.bf16.msra.mxu0 0
      %612 = vmatprep.subr.bf16.mxu0 0
      %613 = vmatpush1.bf16.msra.mxu0 0
      %614 = vmatprep.subr.bf16.mxu0 0
      %615 = vmatpush1.bf16.msra.mxu0 0
      %616 = vmatprep.subr.bf16.mxu0 0
      %617 = vmatpush1.bf16.msra.mxu0 0
      %618 = vmatprep.subr.bf16.mxu0 0
      %619 = vmatpush1.bf16.msra.mxu0 0
      %620 = vmatprep.subr.bf16.mxu0 0
      %621 = vmatpush1.bf16.msra.mxu0 0
      %622 = vmatprep.subr.bf16.mxu0 0
      %623 = vmatpush1.bf16.msra.mxu0 0
      %624 = vmatprep.subr.bf16.mxu0 0
      %625 = vmatpush1.bf16.msra.mxu0 0
      %626 = vmatprep.subr.bf16.mxu0 0
      %627 = vmatpush1.bf16.msra.mxu0 0
      %628 = vmatprep.subr.bf16.mxu0 0
      %629 = vmatpush1.bf16.msra.mxu0 0
      %630 = vmatprep.subr.bf16.mxu0 0
      %631 = vmatpush1.bf16.msra.mxu0 0
      %632 = vmatprep.subr.bf16.mxu0 0
      %633 = vmatpush1.bf16.msra.mxu0 0
      %634 = vmatprep.mubr.bf16.mxu0 0
      %635 = vmatmul.mubr.bf16.gmra.mrb[0].mxu0 %v587
      %v636 = vpop.f32.mrb[0].mxu0
      %v637 = vadd.f32 0.0, %v636
      %v638 = vpop.f32.mrb[0].mxu0
      %v639 = vpop.f32.mrb[0].mxu0
      %v640 = vadd.f32 0.0, %v639
      %v641 = vpop.f32.mrb[0].mxu0
      %642 = vmatprep.mubr.bf16.mxu0 0
      %643 = vmatmul.mubr.bf16.gmra.mrb[0].mxu0 %v590
      %v644 = vpop.f32.mrb[0].mxu0
      %v645 = vadd.f32 0.0, %v644
      %v646 = vpop.f32.mrb[0].mxu0
      %v647 = vpop.f32.mrb[0].mxu0
      %v648 = vadd.f32 0.0, %v647
      %v649 = vpop.f32.mrb[0].mxu0
      %650 = vmatprep.mubr.bf16.mxu0 0
      %651 = vmatmul.mubr.bf16.gmra.mrb[0].mxu0 %v593
      %v652 = vpop.f32.mrb[0].mxu0
      %v653 = vadd.f32 0.0, %v652
      %v654 = vpop.f32.mrb[0].mxu0
      %v655 = vpop.f32.mrb[0].mxu0
      %v656 = vadd.f32 0.0, %v655
      %v657 = vpop.f32.mrb[0].mxu0
      %658 = vmatprep.mubr.bf16.mxu0 0
      %659 = vmatmul.mubr.bf16.gmra.mrb[0].mxu0 %v596
      %v660 = vpop.f32.mrb[0].mxu0
      %v661 = vadd.f32 0.0, %v660
      %v662 = vpop.f32.mrb[0].mxu0
      %v663 = vpop.f32.mrb[0].mxu0
      %v664 = vadd.f32 0.0, %v663
      %v665 = vpop.f32.mrb[0].mxu0
      %666 = vdwg.mxu0
      %v675 = vunpack.c.l.b16 %v459
      %v676 = vunpack.c.l.b16 %v460
      %v677 = vunpack.c.l.b16 %v462
      %v678 = vunpack.c.l.b16 %v463
      %v679 = vunpack.c.l.b16 %v465
      %v680 = vunpack.c.l.b16 %v466
      %v681 = vunpack.c.l.b16 %v468
      %v682 = vunpack.c.l.b16 %v469
      %v683 = vpack.c.b16 %v676, %v675
      %v684 = vpack.c.b16 %v678, %v677
      %v685 = vpack.c.b16 %v680, %v679
      %v686 = vpack.c.b16 %v682, %v681
      %v688 = vsel %vm585, %v683, 0
      %v691 = vsel %vm585, %v684, 0
      %v694 = vsel %vm585, %v685, 0
      %v697 = vsel %vm585, %v686, 0
      %v700 = vsel %vm598, %v471, 0
      %702 = vmatprep.subr.bf16.mxu0 0
      %703 = vmatpush1.bf16.msra.mxu0 %v700
      %704 = vmatprep.subr.bf16.mxu0 0
      %705 = vmatpush1.bf16.msra.mxu0 0
      %706 = vmatprep.subr.bf16.mxu0 0
      %707 = vmatpush1.bf16.msra.mxu0 0
      %708 = vmatprep.subr.bf16.mxu0 0
      %709 = vmatpush1.bf16.msra.mxu0 0
      %710 = vmatprep.subr.bf16.mxu0 0
      %711 = vmatpush1.bf16.msra.mxu0 0
      %712 = vmatprep.subr.bf16.mxu0 0
      %713 = vmatpush1.bf16.msra.mxu0 0
      %714 = vmatprep.subr.bf16.mxu0 0
      %715 = vmatpush1.bf16.msra.mxu0 0
      %716 = vmatprep.subr.bf16.mxu0 0
      %717 = vmatpush1.bf16.msra.mxu0 0
      %718 = vmatprep.subr.bf16.mxu0 0
      %719 = vmatpush1.bf16.msra.mxu0 0
      %720 = vmatprep.subr.bf16.mxu0 0
      %721 = vmatpush1.bf16.msra.mxu0 0
      %722 = vmatprep.subr.bf16.mxu0 0
      %723 = vmatpush1.bf16.msra.mxu0 0
      %724 = vmatprep.subr.bf16.mxu0 0
      %725 = vmatpush1.bf16.msra.mxu0 0
      %726 = vmatprep.subr.bf16.mxu0 0
      %727 = vmatpush1.bf16.msra.mxu0 0
      %728 = vmatprep.subr.bf16.mxu0 0
      %729 = vmatpush1.bf16.msra.mxu0 0
      %730 = vmatprep.subr.bf16.mxu0 0
      %731 = vmatpush1.bf16.msra.mxu0 0
      %732 = vmatprep.subr.bf16.mxu0 0
      %733 = vmatpush1.bf16.msra.mxu0 0
      %734 = vmatprep.mubr.bf16.mxu0 0
      %735 = vmatmul.mubr.bf16.gmra.mrb[0].mxu0 %v688
      %v736 = vpop.f32.mrb[0].mxu0
      %v737 = vadd.f32 %v637, %v736
      %v738 = vpop.f32.mrb[0].mxu0
      %v739 = vpop.f32.mrb[0].mxu0
      %v740 = vadd.f32 %v640, %v739
      %v741 = vpop.f32.mrb[0].mxu0
      %742 = vmatprep.mubr.bf16.mxu0 0
      %743 = vmatmul.mubr.bf16.gmra.mrb[0].mxu0 %v691
      %v744 = vpop.f32.mrb[0].mxu0
      %v745 = vadd.f32 %v645, %v744
      %v746 = vpop.f32.mrb[0].mxu0
      %v747 = vpop.f32.mrb[0].mxu0
      %v748 = vadd.f32 %v648, %v747
      %v749 = vpop.f32.mrb[0].mxu0
      %750 = vmatprep.mubr.bf16.mxu0 0
      %751 = vmatmul.mubr.bf16.gmra.mrb[0].mxu0 %v694
      %v752 = vpop.f32.mrb[0].mxu0
      %v753 = vadd.f32 %v653, %v752
      %v754 = vpop.f32.mrb[0].mxu0
      %v755 = vpop.f32.mrb[0].mxu0
      %v756 = vadd.f32 %v656, %v755
      %v757 = vpop.f32.mrb[0].mxu0
      %758 = vmatprep.mubr.bf16.mxu0 0
      %759 = vmatmul.mubr.bf16.gmra.mrb[0].mxu0 %v697
      %v760 = vpop.f32.mrb[0].mxu0
      %v761 = vadd.f32 %v661, %v760
      %v762 = vpop.f32.mrb[0].mxu0
      %v763 = vpop.f32.mrb[0].mxu0
      %v764 = vadd.f32 %v664, %v763
      %v765 = vpop.f32.mrb[0].mxu0
      %766 = vdwg.mxu0
      %vm771 = vcmask 1042432
      %vm772 = vcmask 1046532
      %vm773 = vmor %vm771, %vm772
      %v774 = vrot.slane %v459, 5
      %v775 = vrot.slane %v774, 4
      %v776 = vrot.slane %v460, 5
      %v777 = vsel %vm773, %v775, %v776
      %v778 = vrot.slane %v776, 4
      %v779 = vrot.slane %v461, 5
      %v780 = vsel %vm773, %v778, %v779
      %v781 = vrot.slane %v462, 5
      %v782 = vrot.slane %v781, 4
      %v783 = vrot.slane %v463, 5
      %v784 = vsel %vm773, %v782, %v783
      %v785 = vrot.slane %v783, 4
      %v786 = vrot.slane %v464, 5
      %v787 = vsel %vm773, %v785, %v786
      %v788 = vrot.slane %v465, 5
      %v789 = vrot.slane %v788, 4
      %v790 = vrot.slane %v466, 5
      %v791 = vsel %vm773, %v789, %v790
      %v792 = vrot.slane %v790, 4
      %v793 = vrot.slane %v467, 5
      %v794 = vsel %vm773, %v792, %v793
      %v795 = vrot.slane %v468, 5
      %v796 = vrot.slane %v795, 4
      %v797 = vrot.slane %v469, 5
      %v798 = vsel %vm773, %v796, %v797
      %v799 = vrot.slane %v797, 4
      %v800 = vrot.slane %v470, 5
      %v801 = vsel %vm773, %v799, %v800
      %s802 = scalar_lea.vmem %s3, 4
      %v803 = vld [vmem:[%s802] sm:$0x3]
      %v804 = vunpack.c.l.b16 %v777
      %v805 = vunpack.c.l.b16 %v780
      %v806 = vunpack.c.l.b16 %v784
      %v807 = vunpack.c.l.b16 %v787
      %v808 = vunpack.c.l.b16 %v791
      %v809 = vunpack.c.l.b16 %v794
      %v810 = vunpack.c.l.b16 %v798
      %v811 = vunpack.c.l.b16 %v801
      %v812 = vpack.c.b16 %v805, %v804
      %v813 = vpack.c.b16 %v807, %v806
      %v814 = vpack.c.b16 %v809, %v808
      %v815 = vpack.c.b16 %v811, %v810
      %v817 = vsel %vm585, %v812, 0
      %v820 = vsel %vm585, %v813, 0
      %v823 = vsel %vm585, %v814, 0
      %v826 = vsel %vm585, %v815, 0
      %v829 = vsel %vm598, %v803, 0
      %831 = vmatprep.subr.bf16.mxu0 0
      %832 = vmatpush1.bf16.msra.mxu0 %v829
      %833 = vmatprep.subr.bf16.mxu0 0
      %834 = vmatpush1.bf16.msra.mxu0 0
      %835 = vmatprep.subr.bf16.mxu0 0
      %836 = vmatpush1.bf16.msra.mxu0 0
      %837 = vmatprep.subr.bf16.mxu0 0
      %838 = vmatpush1.bf16.msra.mxu0 0
      %839 = vmatprep.subr.bf16.mxu0 0
      %840 = vmatpush1.bf16.msra.mxu0 0
      %841 = vmatprep.subr.bf16.mxu0 0
      %842 = vmatpush1.bf16.msra.mxu0 0
      %843 = vmatprep.subr.bf16.mxu0 0
      %844 = vmatpush1.bf16.msra.mxu0 0
      %845 = vmatprep.subr.bf16.mxu0 0
      %846 = vmatpush1.bf16.msra.mxu0 0
      %847 = vmatprep.subr.bf16.mxu0 0
      %848 = vmatpush1.bf16.msra.mxu0 0
      %849 = vmatprep.subr.bf16.mxu0 0
      %850 = vmatpush1.bf16.msra.mxu0 0
      %851 = vmatprep.subr.bf16.mxu0 0
      %852 = vmatpush1.bf16.msra.mxu0 0
      %853 = vmatprep.subr.bf16.mxu0 0
      %854 = vmatpush1.bf16.msra.mxu0 0
      %855 = vmatprep.subr.bf16.mxu0 0
      %856 = vmatpush1.bf16.msra.mxu0 0
      %857 = vmatprep.subr.bf16.mxu0 0
      %858 = vmatpush1.bf16.msra.mxu0 0
      %859 = vmatprep.subr.bf16.mxu0 0
      %860 = vmatpush1.bf16.msra.mxu0 0
      %861 = vmatprep.subr.bf16.mxu0 0
      %862 = vmatpush1.bf16.msra.mxu0 0
      %863 = vmatprep.mubr.bf16.mxu0 0
      %864 = vmatmul.mubr.bf16.gmra.mrb[0].mxu0 %v817
      %v865 = vpop.f32.mrb[0].mxu0
      %v866 = vadd.f32 0.0, %v865
      %v867 = vpop.f32.mrb[0].mxu0
      %v868 = vpop.f32.mrb[0].mxu0
      %v869 = vadd.f32 0.0, %v868
      %v870 = vpop.f32.mrb[0].mxu0
      %871 = vmatprep.mubr.bf16.mxu0 0
      %872 = vmatmul.mubr.bf16.gmra.mrb[0].mxu0 %v820
      %v873 = vpop.f32.mrb[0].mxu0
      %v874 = vadd.f32 0.0, %v873
      %v875 = vpop.f32.mrb[0].mxu0
      %v876 = vpop.f32.mrb[0].mxu0
      %v877 = vadd.f32 0.0, %v876
      %v878 = vpop.f32.mrb[0].mxu0
      %879 = vmatprep.mubr.bf16.mxu0 0
      %880 = vmatmul.mubr.bf16.gmra.mrb[0].mxu0 %v823
      %v881 = vpop.f32.mrb[0].mxu0
      %v882 = vadd.f32 0.0, %v881
      %v883 = vpop.f32.mrb[0].mxu0
      %v884 = vpop.f32.mrb[0].mxu0
      %v885 = vadd.f32 0.0, %v884
      %v886 = vpop.f32.mrb[0].mxu0
      %887 = vmatprep.mubr.bf16.mxu0 0
      %888 = vmatmul.mubr.bf16.gmra.mrb[0].mxu0 %v826
      %v889 = vpop.f32.mrb[0].mxu0
      %v890 = vadd.f32 0.0, %v889
      %v891 = vpop.f32.mrb[0].mxu0
      %v892 = vpop.f32.mrb[0].mxu0
      %v893 = vadd.f32 0.0, %v892
      %v894 = vpop.f32.mrb[0].mxu0
      %895 = vdwg.mxu0
      %v896 = vadd.f32 %v737, %v866
      %v897 = vadd.f32 %v740, %v869
      %v898 = vadd.f32 %v745, %v874
      %v899 = vadd.f32 %v748, %v877
      %v900 = vadd.f32 %v753, %v882
      %v901 = vadd.f32 %v756, %v885
      %v902 = vadd.f32 %v761, %v890
      %v903 = vadd.f32 %v764, %v893
      %vm904 = vcmask 261120
      %905 = vst.msk [vmem:[#allocation3] sm:$0xff] %vm904, %v896
      %906 = vst.msk [vmem:[#allocation3 + $0x8] sm:$0xff] %vm904, %v897
      %907 = vst.msk [vmem:[#allocation3 + $0x10] sm:$0xff] %vm904, %v898
      %908 = vst.msk [vmem:[#allocation3 + $0x18] sm:$0xff] %vm904, %v899
      %909 = vst.msk [vmem:[#allocation3 + $0x20] sm:$0xff] %vm904, %v900
      %910 = vst.msk [vmem:[#allocation3 + $0x28] sm:$0xff] %vm904, %v901
      %911 = vst.msk [vmem:[#allocation3 + $0x30] sm:$0xff] %vm904, %v902
      %912 = vst.msk [vmem:[#allocation3 + $0x38] sm:$0xff] %vm904, %v903
      %v913 = vld [vmem:[%s425] sm:$0xf]
      %v914 = vld [vmem:[%s425 + $0x4] sm:$0xf]
      %v915 = vld [vmem:[%s425 + $0x8] sm:$0x1]
      %v916 = vld [vmem:[%s425 + $0xc] sm:$0xf]
      %v917 = vld [vmem:[%s425 + $0x10] sm:$0xf]
      %v918 = vld [vmem:[%s425 + $0x14] sm:$0x1]
      %v919 = vld [vmem:[%s425 + $0x18] sm:$0xf]
      %v920 = vld [vmem:[%s425 + $0x1c] sm:$0xf]
      %v921 = vld [vmem:[%s425 + $0x20] sm:$0x1]
      %v922 = vld [vmem:[%s425 + $0x24] sm:$0xf]
      %v923 = vld [vmem:[%s425 + $0x28] sm:$0xf]
      %v924 = vld [vmem:[%s425 + $0x2c] sm:$0x1]
      %s925 = scalar_lea.vmem %s3, 6
      %v926 = vld [vmem:[%s925] sm:$0x3]
      %v928 = vshrl.u32 %v913, 16
      %v930 = vrot.slane %v928, 4
      %v931 = vshll.u32 %v913, 16
      %v933 = vrot.slane %v931, 5
      %v934 = vor.u32 %v930, %v933
      %v935 = vrot.slane %v934, 4
      %v937 = vshll.u32 %v914, 16
      %v939 = vrot.slane %v937, 5
      %v940 = vsel %vm474, %v935, %v939
      %v941 = vshrl.u32 %v914, 16
      %v943 = vrot.slane %v941, 4
      %v944 = vor.u32 %v943, %v939
      %v945 = vrot.slane %v944, 4
      %v947 = vshll.u32 %v915, 16
      %v949 = vrot.slane %v947, 5
      %v950 = vsel %vm474, %v945, %v949
      %v952 = vshrl.u32 %v916, 16
      %v954 = vrot.slane %v952, 4
      %v955 = vshll.u32 %v916, 16
      %v957 = vrot.slane %v955, 5
      %v958 = vor.u32 %v954, %v957
      %v959 = vrot.slane %v958, 4
      %v961 = vshll.u32 %v917, 16
      %v963 = vrot.slane %v961, 5
      %v964 = vsel %vm474, %v959, %v963
      %v965 = vshrl.u32 %v917, 16
      %v967 = vrot.slane %v965, 4
      %v968 = vor.u32 %v967, %v963
      %v969 = vrot.slane %v968, 4
      %v971 = vshll.u32 %v918, 16
      %v973 = vrot.slane %v971, 5
      %v974 = vsel %vm474, %v969, %v973
      %v976 = vshrl.u32 %v919, 16
      %v978 = vrot.slane %v976, 4
      %v979 = vshll.u32 %v919, 16
      %v981 = vrot.slane %v979, 5
      %v982 = vor.u32 %v978, %v981
      %v983 = vrot.slane %v982, 4
      %v985 = vshll.u32 %v920, 16
      %v987 = vrot.slane %v985, 5
      %v988 = vsel %vm474, %v983, %v987
      %v989 = vshrl.u32 %v920, 16
      %v991 = vrot.slane %v989, 4
      %v992 = vor.u32 %v991, %v987
      %v993 = vrot.slane %v992, 4
      %v995 = vshll.u32 %v921, 16
      %v997 = vrot.slane %v995, 5
      %v998 = vsel %vm474, %v993, %v997
      %v1000 = vshrl.u32 %v922, 16
      %v1002 = vrot.slane %v1000, 4
      %v1003 = vshll.u32 %v922, 16
      %v1005 = vrot.slane %v1003, 5
      %v1006 = vor.u32 %v1002, %v1005
      %v1007 = vrot.slane %v1006, 4
      %v1009 = vshll.u32 %v923, 16
      %v1011 = vrot.slane %v1009, 5
      %v1012 = vsel %vm474, %v1007, %v1011
      %v1013 = vshrl.u32 %v923, 16
      %v1015 = vrot.slane %v1013, 4
      %v1016 = vor.u32 %v1015, %v1011
      %v1017 = vrot.slane %v1016, 4
      %v1019 = vshll.u32 %v924, 16
      %v1021 = vrot.slane %v1019, 5
      %v1022 = vsel %vm474, %v1017, %v1021
      %s1023 = scalar_lea.vmem %s3, 8
      %v1024 = vld [vmem:[%s1023] sm:$0x3]
      %v1025 = vunpack.c.l.b16 %v940
      %v1026 = vunpack.c.l.b16 %v950
      %v1027 = vunpack.c.l.b16 %v964
      %v1028 = vunpack.c.l.b16 %v974
      %v1029 = vunpack.c.l.b16 %v988
      %v1030 = vunpack.c.l.b16 %v998
      %v1031 = vunpack.c.l.b16 %v1012
      %v1032 = vunpack.c.l.b16 %v1022
      %v1033 = vpack.c.b16 %v1026, %v1025
      %v1034 = vpack.c.b16 %v1028, %v1027
      %v1035 = vpack.c.b16 %v1030, %v1029
      %v1036 = vpack.c.b16 %v1032, %v1031
      %v1038 = vsel %vm585, %v1033, 0
      %v1041 = vsel %vm585, %v1034, 0
      %v1044 = vsel %vm585, %v1035, 0
      %v1047 = vsel %vm585, %v1036, 0
      %v1050 = vsel %vm598, %v1024, 0
      %1052 = vmatprep.subr.bf16.mxu0 0
      %1053 = vmatpush1.bf16.msra.mxu0 %v1050
      %1054 = vmatprep.subr.bf16.mxu0 0
      %1055 = vmatpush1.bf16.msra.mxu0 0
      %1056 = vmatprep.subr.bf16.mxu0 0
      %1057 = vmatpush1.bf16.msra.mxu0 0
      %1058 = vmatprep.subr.bf16.mxu0 0
      %1059 = vmatpush1.bf16.msra.mxu0 0
      %1060 = vmatprep.subr.bf16.mxu0 0
      %1061 = vmatpush1.bf16.msra.mxu0 0
      %1062 = vmatprep.subr.bf16.mxu0 0
      %1063 = vmatpush1.bf16.msra.mxu0 0
      %1064 = vmatprep.subr.bf16.mxu0 0
      %1065 = vmatpush1.bf16.msra.mxu0 0
      %1066 = vmatprep.subr.bf16.mxu0 0
      %1067 = vmatpush1.bf16.msra.mxu0 0
      %1068 = vmatprep.subr.bf16.mxu0 0
      %1069 = vmatpush1.bf16.msra.mxu0 0
      %1070 = vmatprep.subr.bf16.mxu0 0
      %1071 = vmatpush1.bf16.msra.mxu0 0
      %1072 = vmatprep.subr.bf16.mxu0 0
      %1073 = vmatpush1.bf16.msra.mxu0 0
      %1074 = vmatprep.subr.bf16.mxu0 0
      %1075 = vmatpush1.bf16.msra.mxu0 0
      %1076 = vmatprep.subr.bf16.mxu0 0
      %1077 = vmatpush1.bf16.msra.mxu0 0
      %1078 = vmatprep.subr.bf16.mxu0 0
      %1079 = vmatpush1.bf16.msra.mxu0 0
      %1080 = vmatprep.subr.bf16.mxu0 0
      %1081 = vmatpush1.bf16.msra.mxu0 0
      %1082 = vmatprep.subr.bf16.mxu0 0
      %1083 = vmatpush1.bf16.msra.mxu0 0
      %1084 = vmatprep.mubr.bf16.mxu0 0
      %1085 = vmatmul.mubr.bf16.gmra.mrb[0].mxu0 %v1038
      %v1086 = vpop.f32.mrb[0].mxu0
      %v1087 = vadd.f32 0.0, %v1086
      %v1088 = vpop.f32.mrb[0].mxu0
      %v1089 = vpop.f32.mrb[0].mxu0
      %v1090 = vadd.f32 0.0, %v1089
      %v1091 = vpop.f32.mrb[0].mxu0
      %1092 = vmatprep.mubr.bf16.mxu0 0
      %1093 = vmatmul.mubr.bf16.gmra.mrb[0].mxu0 %v1041
      %v1094 = vpop.f32.mrb[0].mxu0
      %v1095 = vadd.f32 0.0, %v1094
      %v1096 = vpop.f32.mrb[0].mxu0
      %v1097 = vpop.f32.mrb[0].mxu0
      %v1098 = vadd.f32 0.0, %v1097
      %v1099 = vpop.f32.mrb[0].mxu0
      %1100 = vmatprep.mubr.bf16.mxu0 0
      %1101 = vmatmul.mubr.bf16.gmra.mrb[0].mxu0 %v1044
      %v1102 = vpop.f32.mrb[0].mxu0
      %v1103 = vadd.f32 0.0, %v1102
      %v1104 = vpop.f32.mrb[0].mxu0
      %v1105 = vpop.f32.mrb[0].mxu0
      %v1106 = vadd.f32 0.0, %v1105
      %v1107 = vpop.f32.mrb[0].mxu0
      %1108 = vmatprep.mubr.bf16.mxu0 0
      %1109 = vmatmul.mubr.bf16.gmra.mrb[0].mxu0 %v1047
      %v1110 = vpop.f32.mrb[0].mxu0
      %v1111 = vadd.f32 0.0, %v1110
      %v1112 = vpop.f32.mrb[0].mxu0
      %v1113 = vpop.f32.mrb[0].mxu0
      %v1114 = vadd.f32 0.0, %v1113
      %v1115 = vpop.f32.mrb[0].mxu0
      %1116 = vdwg.mxu0
      %v1125 = vunpack.c.l.b16 %v913
      %v1126 = vunpack.c.l.b16 %v914
      %v1127 = vunpack.c.l.b16 %v916
      %v1128 = vunpack.c.l.b16 %v917
      %v1129 = vunpack.c.l.b16 %v919
      %v1130 = vunpack.c.l.b16 %v920
      %v1131 = vunpack.c.l.b16 %v922
      %v1132 = vunpack.c.l.b16 %v923
      %v1133 = vpack.c.b16 %v1126, %v1125
      %v1134 = vpack.c.b16 %v1128, %v1127
      %v1135 = vpack.c.b16 %v1130, %v1129
      %v1136 = vpack.c.b16 %v1132, %v1131
      %v1138 = vsel %vm585, %v1133, 0
      %v1141 = vsel %vm585, %v1134, 0
      %v1144 = vsel %vm585, %v1135, 0
      %v1147 = vsel %vm585, %v1136, 0
      %v1150 = vsel %vm598, %v926, 0
      %1152 = vmatprep.subr.bf16.mxu0 0
      %1153 = vmatpush1.bf16.msra.mxu0 %v1150
      %1154 = vmatprep.subr.bf16.mxu0 0
      %1155 = vmatpush1.bf16.msra.mxu0 0
      %1156 = vmatprep.subr.bf16.mxu0 0
      %1157 = vmatpush1.bf16.msra.mxu0 0
      %1158 = vmatprep.subr.bf16.mxu0 0
      %1159 = vmatpush1.bf16.msra.mxu0 0
      %1160 = vmatprep.subr.bf16.mxu0 0
      %1161 = vmatpush1.bf16.msra.mxu0 0
      %1162 = vmatprep.subr.bf16.mxu0 0
      %1163 = vmatpush1.bf16.msra.mxu0 0
      %1164 = vmatprep.subr.bf16.mxu0 0
      %1165 = vmatpush1.bf16.msra.mxu0 0
      %1166 = vmatprep.subr.bf16.mxu0 0
      %1167 = vmatpush1.bf16.msra.mxu0 0
      %1168 = vmatprep.subr.bf16.mxu0 0
      %1169 = vmatpush1.bf16.msra.mxu0 0
      %1170 = vmatprep.subr.bf16.mxu0 0
      %1171 = vmatpush1.bf16.msra.mxu0 0
      %1172 = vmatprep.subr.bf16.mxu0 0
      %1173 = vmatpush1.bf16.msra.mxu0 0
      %1174 = vmatprep.subr.bf16.mxu0 0
      %1175 = vmatpush1.bf16.msra.mxu0 0
      %1176 = vmatprep.subr.bf16.mxu0 0
      %1177 = vmatpush1.bf16.msra.mxu0 0
      %1178 = vmatprep.subr.bf16.mxu0 0
      %1179 = vmatpush1.bf16.msra.mxu0 0
      %1180 = vmatprep.subr.bf16.mxu0 0
      %1181 = vmatpush1.bf16.msra.mxu0 0
      %1182 = vmatprep.subr.bf16.mxu0 0
      %1183 = vmatpush1.bf16.msra.mxu0 0
      %1184 = vmatprep.mubr.bf16.mxu0 0
      %1185 = vmatmul.mubr.bf16.gmra.mrb[0].mxu0 %v1138
      %v1186 = vpop.f32.mrb[0].mxu0
      %v1187 = vadd.f32 %v1087, %v1186
      %v1188 = vpop.f32.mrb[0].mxu0
      %v1189 = vpop.f32.mrb[0].mxu0
      %v1190 = vadd.f32 %v1090, %v1189
      %v1191 = vpop.f32.mrb[0].mxu0
      %1192 = vmatprep.mubr.bf16.mxu0 0
      %1193 = vmatmul.mubr.bf16.gmra.mrb[0].mxu0 %v1141
      %v1194 = vpop.f32.mrb[0].mxu0
      %v1195 = vadd.f32 %v1095, %v1194
      %v1196 = vpop.f32.mrb[0].mxu0
      %v1197 = vpop.f32.mrb[0].mxu0
      %v1198 = vadd.f32 %v1098, %v1197
      %v1199 = vpop.f32.mrb[0].mxu0
      %1200 = vmatprep.mubr.bf16.mxu0 0
      %1201 = vmatmul.mubr.bf16.gmra.mrb[0].mxu0 %v1144
      %v1202 = vpop.f32.mrb[0].mxu0
      %v1203 = vadd.f32 %v1103, %v1202
      %v1204 = vpop.f32.mrb[0].mxu0
      %v1205 = vpop.f32.mrb[0].mxu0
      %v1206 = vadd.f32 %v1106, %v1205
      %v1207 = vpop.f32.mrb[0].mxu0
      %1208 = vmatprep.mubr.bf16.mxu0 0
      %1209 = vmatmul.mubr.bf16.gmra.mrb[0].mxu0 %v1147
      %v1210 = vpop.f32.mrb[0].mxu0
      %v1211 = vadd.f32 %v1111, %v1210
      %v1212 = vpop.f32.mrb[0].mxu0
      %v1213 = vpop.f32.mrb[0].mxu0
      %v1214 = vadd.f32 %v1114, %v1213
      %v1215 = vpop.f32.mrb[0].mxu0
      %1216 = vdwg.mxu0
      %v1221 = vrot.slane %v913, 5
      %v1222 = vrot.slane %v1221, 4
      %v1223 = vrot.slane %v914, 5
      %v1224 = vsel %vm773, %v1222, %v1223
      %v1225 = vrot.slane %v1223, 4
      %v1226 = vrot.slane %v915, 5
      %v1227 = vsel %vm773, %v1225, %v1226
      %v1228 = vrot.slane %v916, 5
      %v1229 = vrot.slane %v1228, 4
      %v1230 = vrot.slane %v917, 5
      %v1231 = vsel %vm773, %v1229, %v1230
      %v1232 = vrot.slane %v1230, 4
      %v1233 = vrot.slane %v918, 5
      %v1234 = vsel %vm773, %v1232, %v1233
      %v1235 = vrot.slane %v919, 5
      %v1236 = vrot.slane %v1235, 4
      %v1237 = vrot.slane %v920, 5
      %v1238 = vsel %vm773, %v1236, %v1237
      %v1239 = vrot.slane %v1237, 4
      %v1240 = vrot.slane %v921, 5
      %v1241 = vsel %vm773, %v1239, %v1240
      %v1242 = vrot.slane %v922, 5
      %v1243 = vrot.slane %v1242, 4
      %v1244 = vrot.slane %v923, 5
      %v1245 = vsel %vm773, %v1243, %v1244
      %v1246 = vrot.slane %v1244, 4
      %v1247 = vrot.slane %v924, 5
      %v1248 = vsel %vm773, %v1246, %v1247
      %s1249 = scalar_lea.vmem %s3, 10
      %v1250 = vld [vmem:[%s1249] sm:$0x3]
      %v1251 = vunpack.c.l.b16 %v1224
      %v1252 = vunpack.c.l.b16 %v1227
      %v1253 = vunpack.c.l.b16 %v1231
      %v1254 = vunpack.c.l.b16 %v1234
      %v1255 = vunpack.c.l.b16 %v1238
      %v1256 = vunpack.c.l.b16 %v1241
      %v1257 = vunpack.c.l.b16 %v1245
      %v1258 = vunpack.c.l.b16 %v1248
      %v1259 = vpack.c.b16 %v1252, %v1251
      %v1260 = vpack.c.b16 %v1254, %v1253
      %v1261 = vpack.c.b16 %v1256, %v1255
      %v1262 = vpack.c.b16 %v1258, %v1257
      %v1264 = vsel %vm585, %v1259, 0
      %v1267 = vsel %vm585, %v1260, 0
      %v1270 = vsel %vm585, %v1261, 0
      %v1273 = vsel %vm585, %v1262, 0
      %v1276 = vsel %vm598, %v1250, 0
      %1278 = vmatprep.subr.bf16.mxu0 0
      %1279 = vmatpush1.bf16.msra.mxu0 %v1276
      %1280 = vmatprep.subr.bf16.mxu0 0
      %1281 = vmatpush1.bf16.msra.mxu0 0
      %1282 = vmatprep.subr.bf16.mxu0 0
      %1283 = vmatpush1.bf16.msra.mxu0 0
      %1284 = vmatprep.subr.bf16.mxu0 0
      %1285 = vmatpush1.bf16.msra.mxu0 0
      %1286 = vmatprep.subr.bf16.mxu0 0
      %1287 = vmatpush1.bf16.msra.mxu0 0
      %1288 = vmatprep.subr.bf16.mxu0 0
      %1289 = vmatpush1.bf16.msra.mxu0 0
      %1290 = vmatprep.subr.bf16.mxu0 0
      %1291 = vmatpush1.bf16.msra.mxu0 0
      %1292 = vmatprep.subr.bf16.mxu0 0
      %1293 = vmatpush1.bf16.msra.mxu0 0
      %1294 = vmatprep.subr.bf16.mxu0 0
      %1295 = vmatpush1.bf16.msra.mxu0 0
      %1296 = vmatprep.subr.bf16.mxu0 0
      %1297 = vmatpush1.bf16.msra.mxu0 0
      %1298 = vmatprep.subr.bf16.mxu0 0
      %1299 = vmatpush1.bf16.msra.mxu0 0
      %1300 = vmatprep.subr.bf16.mxu0 0
      %1301 = vmatpush1.bf16.msra.mxu0 0
      %1302 = vmatprep.subr.bf16.mxu0 0
      %1303 = vmatpush1.bf16.msra.mxu0 0
      %1304 = vmatprep.subr.bf16.mxu0 0
      %1305 = vmatpush1.bf16.msra.mxu0 0
      %1306 = vmatprep.subr.bf16.mxu0 0
      %1307 = vmatpush1.bf16.msra.mxu0 0
      %1308 = vmatprep.subr.bf16.mxu0 0
      %1309 = vmatpush1.bf16.msra.mxu0 0
      %1310 = vmatprep.mubr.bf16.mxu0 0
      %1311 = vmatmul.mubr.bf16.gmra.mrb[0].mxu0 %v1264
      %v1312 = vpop.f32.mrb[0].mxu0
      %v1313 = vadd.f32 0.0, %v1312
      %v1314 = vpop.f32.mrb[0].mxu0
      %v1315 = vpop.f32.mrb[0].mxu0
      %v1316 = vadd.f32 0.0, %v1315
      %v1317 = vpop.f32.mrb[0].mxu0
      %1318 = vmatprep.mubr.bf16.mxu0 0
      %1319 = vmatmul.mubr.bf16.gmra.mrb[0].mxu0 %v1267
      %v1320 = vpop.f32.mrb[0].mxu0
      %v1321 = vadd.f32 0.0, %v1320
      %v1322 = vpop.f32.mrb[0].mxu0
      %v1323 = vpop.f32.mrb[0].mxu0
      %v1324 = vadd.f32 0.0, %v1323
      %v1325 = vpop.f32.mrb[0].mxu0
      %1326 = vmatprep.mubr.bf16.mxu0 0
      %1327 = vmatmul.mubr.bf16.gmra.mrb[0].mxu0 %v1270
      %v1328 = vpop.f32.mrb[0].mxu0
      %v1329 = vadd.f32 0.0, %v1328
      %v1330 = vpop.f32.mrb[0].mxu0
      %v1331 = vpop.f32.mrb[0].mxu0
      %v1332 = vadd.f32 0.0, %v1331
      %v1333 = vpop.f32.mrb[0].mxu0
      %1334 = vmatprep.mubr.bf16.mxu0 0
      %1335 = vmatmul.mubr.bf16.gmra.mrb[0].mxu0 %v1273
      %v1336 = vpop.f32.mrb[0].mxu0
      %v1337 = vadd.f32 0.0, %v1336
      %v1338 = vpop.f32.mrb[0].mxu0
      %v1339 = vpop.f32.mrb[0].mxu0
      %v1340 = vadd.f32 0.0, %v1339
      %v1341 = vpop.f32.mrb[0].mxu0
      %1342 = vdwg.mxu0
      %v1343 = vadd.f32 %v1187, %v1313
      %v1344 = vadd.f32 %v1190, %v1316
      %v1345 = vadd.f32 %v1195, %v1321
      %v1346 = vadd.f32 %v1198, %v1324
      %v1347 = vadd.f32 %v1203, %v1329
      %v1348 = vadd.f32 %v1206, %v1332
      %v1349 = vadd.f32 %v1211, %v1337
      %v1350 = vadd.f32 %v1214, %v1340
      %v1351 = vld [vmem:[#allocation3] sm:$0xff]
      %v1352 = vld [vmem:[#allocation3 + $0x8] sm:$0xff]
      %v1353 = vld [vmem:[#allocation3 + $0x10] sm:$0xff]
      %v1354 = vld [vmem:[#allocation3 + $0x18] sm:$0xff]
      %v1355 = vld [vmem:[#allocation3 + $0x20] sm:$0xff]
      %v1356 = vld [vmem:[#allocation3 + $0x28] sm:$0xff]
      %v1357 = vld [vmem:[#allocation3 + $0x30] sm:$0xff]
      %v1358 = vld [vmem:[#allocation3 + $0x38] sm:$0xff]
      %v1359 = vadd.f32 %v1351, %v1343
      %v1360 = vadd.f32 %v1352, %v1344
      %v1361 = vadd.f32 %v1353, %v1345
      %v1362 = vadd.f32 %v1354, %v1346
      %v1363 = vadd.f32 %v1355, %v1347
      %v1364 = vadd.f32 %v1356, %v1348
      %v1365 = vadd.f32 %v1357, %v1349
      %v1366 = vadd.f32 %v1358, %v1350
      %1367 = vst.msk [vmem:[#allocation3] sm:$0xff] %vm904, %v1359
      %1368 = vst.msk [vmem:[#allocation3 + $0x8] sm:$0xff] %vm904, %v1360
      %1369 = vst.msk [vmem:[#allocation3 + $0x10] sm:$0xff] %vm904, %v1361
      %1370 = vst.msk [vmem:[#allocation3 + $0x18] sm:$0xff] %vm904, %v1362
      %1371 = vst.msk [vmem:[#allocation3 + $0x20] sm:$0xff] %vm904, %v1363
      %1372 = vst.msk [vmem:[#allocation3 + $0x28] sm:$0xff] %vm904, %v1364
      %1373 = vst.msk [vmem:[#allocation3 + $0x30] sm:$0xff] %vm904, %v1365
      %1374 = vst.msk [vmem:[#allocation3 + $0x38] sm:$0xff] %vm904, %v1366
      %s1375 = scalar_lea.vmem [#allocation2], 24
      %v1376 = vld [vmem:[%s1375] sm:$0xf]
      %v1377 = vld [vmem:[%s1375 + $0x4] sm:$0xf]
      %v1378 = vld [vmem:[%s1375 + $0x8] sm:$0x1]
      %v1379 = vld [vmem:[%s1375 + $0xc] sm:$0xf]
      %v1380 = vld [vmem:[%s1375 + $0x10] sm:$0xf]
      %v1381 = vld [vmem:[%s1375 + $0x14] sm:$0x1]
      %v1382 = vld [vmem:[%s1375 + $0x18] sm:$0xf]
      %v1383 = vld [vmem:[%s1375 + $0x1c] sm:$0xf]
      %v1384 = vld [vmem:[%s1375 + $0x20] sm:$0x1]
      %v1385 = vld [vmem:[%s1375 + $0x24] sm:$0xf]
      %v1386 = vld [vmem:[%s1375 + $0x28] sm:$0xf]
      %v1387 = vld [vmem:[%s1375 + $0x2c] sm:$0x1]
      %s1388 = scalar_lea.vmem %s3, 12
      %v1389 = vld [vmem:[%s1388] sm:$0x3]
      %v1391 = vshrl.u32 %v1376, 16
      %v1393 = vrot.slane %v1391, 4
      %v1394 = vshll.u32 %v1376, 16
      %v1396 = vrot.slane %v1394, 5
      %v1397 = vor.u32 %v1393, %v1396
      %v1398 = vrot.slane %v1397, 4
      %v1400 = vshll.u32 %v1377, 16
      %v1402 = vrot.slane %v1400, 5
      %v1403 = vsel %vm474, %v1398, %v1402
      %v1404 = vshrl.u32 %v1377, 16
      %v1406 = vrot.slane %v1404, 4
      %v1407 = vor.u32 %v1406, %v1402
      %v1408 = vrot.slane %v1407, 4
      %v1410 = vshll.u32 %v1378, 16
      %v1412 = vrot.slane %v1410, 5
      %v1413 = vsel %vm474, %v1408, %v1412
      %v1415 = vshrl.u32 %v1379, 16
      %v1417 = vrot.slane %v1415, 4
      %v1418 = vshll.u32 %v1379, 16
      %v1420 = vrot.slane %v1418, 5
      %v1421 = vor.u32 %v1417, %v1420
      %v1422 = vrot.slane %v1421, 4
      %v1424 = vshll.u32 %v1380, 16
      %v1426 = vrot.slane %v1424, 5
      %v1427 = vsel %vm474, %v1422, %v1426
      %v1428 = vshrl.u32 %v1380, 16
      %v1430 = vrot.slane %v1428, 4
      %v1431 = vor.u32 %v1430, %v1426
      %v1432 = vrot.slane %v1431, 4
      %v1434 = vshll.u32 %v1381, 16
      %v1436 = vrot.slane %v1434, 5
      %v1437 = vsel %vm474, %v1432, %v1436
      %v1439 = vshrl.u32 %v1382, 16
      %v1441 = vrot.slane %v1439, 4
      %v1442 = vshll.u32 %v1382, 16
      %v1444 = vrot.slane %v1442, 5
      %v1445 = vor.u32 %v1441, %v1444
      %v1446 = vrot.slane %v1445, 4
      %v1448 = vshll.u32 %v1383, 16
      %v1450 = vrot.slane %v1448, 5
      %v1451 = vsel %vm474, %v1446, %v1450
      %v1452 = vshrl.u32 %v1383, 16
      %v1454 = vrot.slane %v1452, 4
      %v1455 = vor.u32 %v1454, %v1450
      %v1456 = vrot.slane %v1455, 4
      %v1458 = vshll.u32 %v1384, 16
      %v1460 = vrot.slane %v1458, 5
      %v1461 = vsel %vm474, %v1456, %v1460
      %v1463 = vshrl.u32 %v1385, 16
      %v1465 = vrot.slane %v1463, 4
      %v1466 = vshll.u32 %v1385, 16
      %v1468 = vrot.slane %v1466, 5
      %v1469 = vor.u32 %v1465, %v1468
      %v1470 = vrot.slane %v1469, 4
      %v1472 = vshll.u32 %v1386, 16
      %v1474 = vrot.slane %v1472, 5
      %v1475 = vsel %vm474, %v1470, %v1474
      %v1476 = vshrl.u32 %v1386, 16
      %v1478 = vrot.slane %v1476, 4
      %v1479 = vor.u32 %v1478, %v1474
      %v1480 = vrot.slane %v1479, 4
      %v1482 = vshll.u32 %v1387, 16
      %v1484 = vrot.slane %v1482, 5
      %v1485 = vsel %vm474, %v1480, %v1484
      %s1486 = scalar_lea.vmem %s3, 14
      %v1487 = vld [vmem:[%s1486] sm:$0x3]
      %v1488 = vunpack.c.l.b16 %v1403
      %v1489 = vunpack.c.l.b16 %v1413
      %v1490 = vunpack.c.l.b16 %v1427
      %v1491 = vunpack.c.l.b16 %v1437
      %v1492 = vunpack.c.l.b16 %v1451
      %v1493 = vunpack.c.l.b16 %v1461
      %v1494 = vunpack.c.l.b16 %v1475
      %v1495 = vunpack.c.l.b16 %v1485
      %v1496 = vpack.c.b16 %v1489, %v1488
      %v1497 = vpack.c.b16 %v1491, %v1490
      %v1498 = vpack.c.b16 %v1493, %v1492
      %v1499 = vpack.c.b16 %v1495, %v1494
      %v1501 = vsel %vm585, %v1496, 0
      %v1504 = vsel %vm585, %v1497, 0
      %v1507 = vsel %vm585, %v1498, 0
      %v1510 = vsel %vm585, %v1499, 0
      %v1513 = vsel %vm598, %v1487, 0
      %1515 = vmatprep.subr.bf16.mxu0 0
      %1516 = vmatpush1.bf16.msra.mxu0 %v1513
      %1517 = vmatprep.subr.bf16.mxu0 0
      %1518 = vmatpush1.bf16.msra.mxu0 0
      %1519 = vmatprep.subr.bf16.mxu0 0
      %1520 = vmatpush1.bf16.msra.mxu0 0
      %1521 = vmatprep.subr.bf16.mxu0 0
      %1522 = vmatpush1.bf16.msra.mxu0 0
      %1523 = vmatprep.subr.bf16.mxu0 0
      %1524 = vmatpush1.bf16.msra.mxu0 0
      %1525 = vmatprep.subr.bf16.mxu0 0
      %1526 = vmatpush1.bf16.msra.mxu0 0
      %1527 = vmatprep.subr.bf16.mxu0 0
      %1528 = vmatpush1.bf16.msra.mxu0 0
      %1529 = vmatprep.subr.bf16.mxu0 0
      %1530 = vmatpush1.bf16.msra.mxu0 0
      %1531 = vmatprep.subr.bf16.mxu0 0
      %1532 = vmatpush1.bf16.msra.mxu0 0
      %1533 = vmatprep.subr.bf16.mxu0 0
      %1534 = vmatpush1.bf16.msra.mxu0 0
      %1535 = vmatprep.subr.bf16.mxu0 0
      %1536 = vmatpush1.bf16.msra.mxu0 0
      %1537 = vmatprep.subr.bf16.mxu0 0
      %1538 = vmatpush1.bf16.msra.mxu0 0
      %1539 = vmatprep.subr.bf16.mxu0 0
      %1540 = vmatpush1.bf16.msra.mxu0 0
      %1541 = vmatprep.subr.bf16.mxu0 0
      %1542 = vmatpush1.bf16.msra.mxu0 0
      %1543 = vmatprep.subr.bf16.mxu0 0
      %1544 = vmatpush1.bf16.msra.mxu0 0
      %1545 = vmatprep.subr.bf16.mxu0 0
      %1546 = vmatpush1.bf16.msra.mxu0 0
      %1547 = vmatprep.mubr.bf16.mxu0 0
      %1548 = vmatmul.mubr.bf16.gmra.mrb[0].mxu0 %v1501
      %v1549 = vpop.f32.mrb[0].mxu0
      %v1550 = vadd.f32 0.0, %v1549
      %v1551 = vpop.f32.mrb[0].mxu0
      %v1552 = vpop.f32.mrb[0].mxu0
      %v1553 = vadd.f32 0.0, %v1552
      %v1554 = vpop.f32.mrb[0].mxu0
      %1555 = vmatprep.mubr.bf16.mxu0 0
      %1556 = vmatmul.mubr.bf16.gmra.mrb[0].mxu0 %v1504
      %v1557 = vpop.f32.mrb[0].mxu0
      %v1558 = vadd.f32 0.0, %v1557
      %v1559 = vpop.f32.mrb[0].mxu0
      %v1560 = vpop.f32.mrb[0].mxu0
      %v1561 = vadd.f32 0.0, %v1560
      %v1562 = vpop.f32.mrb[0].mxu0
      %1563 = vmatprep.mubr.bf16.mxu0 0
      %1564 = vmatmul.mubr.bf16.gmra.mrb[0].mxu0 %v1507
      %v1565 = vpop.f32.mrb[0].mxu0
      %v1566 = vadd.f32 0.0, %v1565
      %v1567 = vpop.f32.mrb[0].mxu0
      %v1568 = vpop.f32.mrb[0].mxu0
      %v1569 = vadd.f32 0.0, %v1568
      %v1570 = vpop.f32.mrb[0].mxu0
      %1571 = vmatprep.mubr.bf16.mxu0 0
      %1572 = vmatmul.mubr.bf16.gmra.mrb[0].mxu0 %v1510
      %v1573 = vpop.f32.mrb[0].mxu0
      %v1574 = vadd.f32 0.0, %v1573
      %v1575 = vpop.f32.mrb[0].mxu0
      %v1576 = vpop.f32.mrb[0].mxu0
      %v1577 = vadd.f32 0.0, %v1576
      %v1578 = vpop.f32.mrb[0].mxu0
      %1579 = vdwg.mxu0
      %v1588 = vunpack.c.l.b16 %v1376
      %v1589 = vunpack.c.l.b16 %v1377
      %v1590 = vunpack.c.l.b16 %v1379
      %v1591 = vunpack.c.l.b16 %v1380
      %v1592 = vunpack.c.l.b16 %v1382
      %v1593 = vunpack.c.l.b16 %v1383
      %v1594 = vunpack.c.l.b16 %v1385
      %v1595 = vunpack.c.l.b16 %v1386
      %v1596 = vpack.c.b16 %v1589, %v1588
      %v1597 = vpack.c.b16 %v1591, %v1590
      %v1598 = vpack.c.b16 %v1593, %v1592
      %v1599 = vpack.c.b16 %v1595, %v1594
      %v1601 = vsel %vm585, %v1596, 0
      %v1604 = vsel %vm585, %v1597, 0
      %v1607 = vsel %vm585, %v1598, 0
      %v1610 = vsel %vm585, %v1599, 0
      %v1613 = vsel %vm598, %v1389, 0
      %1615 = vmatprep.subr.bf16.mxu0 0
      %1616 = vmatpush1.bf16.msra.mxu0 %v1613
      %1617 = vmatprep.subr.bf16.mxu0 0
      %1618 = vmatpush1.bf16.msra.mxu0 0
      %1619 = vmatprep.subr.bf16.mxu0 0
      %1620 = vmatpush1.bf16.msra.mxu0 0
      %1621 = vmatprep.subr.bf16.mxu0 0
      %1622 = vmatpush1.bf16.msra.mxu0 0
      %1623 = vmatprep.subr.bf16.mxu0 0
      %1624 = vmatpush1.bf16.msra.mxu0 0
      %1625 = vmatprep.subr.bf16.mxu0 0
      %1626 = vmatpush1.bf16.msra.mxu0 0
      %1627 = vmatprep.subr.bf16.mxu0 0
      %1628 = vmatpush1.bf16.msra.mxu0 0
      %1629 = vmatprep.subr.bf16.mxu0 0
      %1630 = vmatpush1.bf16.msra.mxu0 0
      %1631 = vmatprep.subr.bf16.mxu0 0
      %1632 = vmatpush1.bf16.msra.mxu0 0
      %1633 = vmatprep.subr.bf16.mxu0 0
      %1634 = vmatpush1.bf16.msra.mxu0 0
      %1635 = vmatprep.subr.bf16.mxu0 0
      %1636 = vmatpush1.bf16.msra.mxu0 0
      %1637 = vmatprep.subr.bf16.mxu0 0
      %1638 = vmatpush1.bf16.msra.mxu0 0
      %1639 = vmatprep.subr.bf16.mxu0 0
      %1640 = vmatpush1.bf16.msra.mxu0 0
      %1641 = vmatprep.subr.bf16.mxu0 0
      %1642 = vmatpush1.bf16.msra.mxu0 0
      %1643 = vmatprep.subr.bf16.mxu0 0
      %1644 = vmatpush1.bf16.msra.mxu0 0
      %1645 = vmatprep.subr.bf16.mxu0 0
      %1646 = vmatpush1.bf16.msra.mxu0 0
      %1647 = vmatprep.mubr.bf16.mxu0 0
      %1648 = vmatmul.mubr.bf16.gmra.mrb[0].mxu0 %v1601
      %v1649 = vpop.f32.mrb[0].mxu0
      %v1650 = vadd.f32 %v1550, %v1649
      %v1651 = vpop.f32.mrb[0].mxu0
      %v1652 = vpop.f32.mrb[0].mxu0
      %v1653 = vadd.f32 %v1553, %v1652
      %v1654 = vpop.f32.mrb[0].mxu0
      %1655 = vmatprep.mubr.bf16.mxu0 0
      %1656 = vmatmul.mubr.bf16.gmra.mrb[0].mxu0 %v1604
      %v1657 = vpop.f32.mrb[0].mxu0
      %v1658 = vadd.f32 %v1558, %v1657
      %v1659 = vpop.f32.mrb[0].mxu0
      %v1660 = vpop.f32.mrb[0].mxu0
      %v1661 = vadd.f32 %v1561, %v1660
      %v1662 = vpop.f32.mrb[0].mxu0
      %1663 = vmatprep.mubr.bf16.mxu0 0
      %1664 = vmatmul.mubr.bf16.gmra.mrb[0].mxu0 %v1607
      %v1665 = vpop.f32.mrb[0].mxu0
      %v1666 = vadd.f32 %v1566, %v1665
      %v1667 = vpop.f32.mrb[0].mxu0
      %v1668 = vpop.f32.mrb[0].mxu0
      %v1669 = vadd.f32 %v1569, %v1668
      %v1670 = vpop.f32.mrb[0].mxu0
      %1671 = vmatprep.mubr.bf16.mxu0 0
      %1672 = vmatmul.mubr.bf16.gmra.mrb[0].mxu0 %v1610
      %v1673 = vpop.f32.mrb[0].mxu0
      %v1674 = vadd.f32 %v1574, %v1673
      %v1675 = vpop.f32.mrb[0].mxu0
      %v1676 = vpop.f32.mrb[0].mxu0
      %v1677 = vadd.f32 %v1577, %v1676
      %v1678 = vpop.f32.mrb[0].mxu0
      %1679 = vdwg.mxu0
      %v1684 = vrot.slane %v1376, 5
      %v1685 = vrot.slane %v1684, 4
      %v1686 = vrot.slane %v1377, 5
      %v1687 = vsel %vm773, %v1685, %v1686
      %v1688 = vrot.slane %v1686, 4
      %v1689 = vrot.slane %v1378, 5
      %v1690 = vsel %vm773, %v1688, %v1689
      %v1691 = vrot.slane %v1379, 5
      %v1692 = vrot.slane %v1691, 4
      %v1693 = vrot.slane %v1380, 5
      %v1694 = vsel %vm773, %v1692, %v1693
      %v1695 = vrot.slane %v1693, 4
      %v1696 = vrot.slane %v1381, 5
      %v1697 = vsel %vm773, %v1695, %v1696
      %v1698 = vrot.slane %v1382, 5
      %v1699 = vrot.slane %v1698, 4
      %v1700 = vrot.slane %v1383, 5
      %v1701 = vsel %vm773, %v1699, %v1700
      %v1702 = vrot.slane %v1700, 4
      %v1703 = vrot.slane %v1384, 5
      %v1704 = vsel %vm773, %v1702, %v1703
      %v1705 = vrot.slane %v1385, 5
      %v1706 = vrot.slane %v1705, 4
      %v1707 = vrot.slane %v1386, 5
      %v1708 = vsel %vm773, %v1706, %v1707
      %v1709 = vrot.slane %v1707, 4
      %v1710 = vrot.slane %v1387, 5
      %v1711 = vsel %vm773, %v1709, %v1710
      %s1712 = scalar_lea.vmem %s3, 16
      %v1713 = vld [vmem:[%s1712] sm:$0x3]
      %v1714 = vunpack.c.l.b16 %v1687
      %v1715 = vunpack.c.l.b16 %v1690
      %v1716 = vunpack.c.l.b16 %v1694
      %v1717 = vunpack.c.l.b16 %v1697
      %v1718 = vunpack.c.l.b16 %v1701
      %v1719 = vunpack.c.l.b16 %v1704
      %v1720 = vunpack.c.l.b16 %v1708
      %v1721 = vunpack.c.l.b16 %v1711
      %v1722 = vpack.c.b16 %v1715, %v1714
      %v1723 = vpack.c.b16 %v1717, %v1716
      %v1724 = vpack.c.b16 %v1719, %v1718
      %v1725 = vpack.c.b16 %v1721, %v1720
      %v1727 = vsel %vm585, %v1722, 0
      %v1730 = vsel %vm585, %v1723, 0
      %v1733 = vsel %vm585, %v1724, 0
      %v1736 = vsel %vm585, %v1725, 0
      %v1739 = vsel %vm598, %v1713, 0
      %1741 = vmatprep.subr.bf16.mxu0 0
      %1742 = vmatpush1.bf16.msra.mxu0 %v1739
      %1743 = vmatprep.subr.bf16.mxu0 0
      %1744 = vmatpush1.bf16.msra.mxu0 0
      %1745 = vmatprep.subr.bf16.mxu0 0
      %1746 = vmatpush1.bf16.msra.mxu0 0
      %1747 = vmatprep.subr.bf16.mxu0 0
      %1748 = vmatpush1.bf16.msra.mxu0 0
      %1749 = vmatprep.subr.bf16.mxu0 0
      %1750 = vmatpush1.bf16.msra.mxu0 0
      %1751 = vmatprep.subr.bf16.mxu0 0
      %1752 = vmatpush1.bf16.msra.mxu0 0
      %1753 = vmatprep.subr.bf16.mxu0 0
      %1754 = vmatpush1.bf16.msra.mxu0 0
      %1755 = vmatprep.subr.bf16.mxu0 0
      %1756 = vmatpush1.bf16.msra.mxu0 0
      %1757 = vmatprep.subr.bf16.mxu0 0
      %1758 = vmatpush1.bf16.msra.mxu0 0
      %1759 = vmatprep.subr.bf16.mxu0 0
      %1760 = vmatpush1.bf16.msra.mxu0 0
      %1761 = vmatprep.subr.bf16.mxu0 0
      %1762 = vmatpush1.bf16.msra.mxu0 0
      %1763 = vmatprep.subr.bf16.mxu0 0
      %1764 = vmatpush1.bf16.msra.mxu0 0
      %1765 = vmatprep.subr.bf16.mxu0 0
      %1766 = vmatpush1.bf16.msra.mxu0 0
      %1767 = vmatprep.subr.bf16.mxu0 0
      %1768 = vmatpush1.bf16.msra.mxu0 0
      %1769 = vmatprep.subr.bf16.mxu0 0
      %1770 = vmatpush1.bf16.msra.mxu0 0
      %1771 = vmatprep.subr.bf16.mxu0 0
      %1772 = vmatpush1.bf16.msra.mxu0 0
      %1773 = vmatprep.mubr.bf16.mxu0 0
      %1774 = vmatmul.mubr.bf16.gmra.mrb[0].mxu0 %v1727
      %v1775 = vpop.f32.mrb[0].mxu0
      %v1776 = vadd.f32 0.0, %v1775
      %v1777 = vpop.f32.mrb[0].mxu0
      %v1778 = vpop.f32.mrb[0].mxu0
      %v1779 = vadd.f32 0.0, %v1778
      %v1780 = vpop.f32.mrb[0].mxu0
      %1781 = vmatprep.mubr.bf16.mxu0 0
      %1782 = vmatmul.mubr.bf16.gmra.mrb[0].mxu0 %v1730
      %v1783 = vpop.f32.mrb[0].mxu0
      %v1784 = vadd.f32 0.0, %v1783
      %v1785 = vpop.f32.mrb[0].mxu0
      %v1786 = vpop.f32.mrb[0].mxu0
      %v1787 = vadd.f32 0.0, %v1786
      %v1788 = vpop.f32.mrb[0].mxu0
      %1789 = vmatprep.mubr.bf16.mxu0 0
      %1790 = vmatmul.mubr.bf16.gmra.mrb[0].mxu0 %v1733
      %v1791 = vpop.f32.mrb[0].mxu0
      %v1792 = vadd.f32 0.0, %v1791
      %v1793 = vpop.f32.mrb[0].mxu0
      %v1794 = vpop.f32.mrb[0].mxu0
      %v1795 = vadd.f32 0.0, %v1794
      %v1796 = vpop.f32.mrb[0].mxu0
      %1797 = vmatprep.mubr.bf16.mxu0 0
      %1798 = vmatmul.mubr.bf16.gmra.mrb[0].mxu0 %v1736
      %v1799 = vpop.f32.mrb[0].mxu0
      %v1800 = vadd.f32 0.0, %v1799
      %v1801 = vpop.f32.mrb[0].mxu0
      %v1802 = vpop.f32.mrb[0].mxu0
      %v1803 = vadd.f32 0.0, %v1802
      %v1804 = vpop.f32.mrb[0].mxu0
      %1805 = vdwg.mxu0
      %v1806 = vadd.f32 %v1650, %v1776
      %v1807 = vadd.f32 %v1653, %v1779
      %v1808 = vadd.f32 %v1658, %v1784
      %v1809 = vadd.f32 %v1661, %v1787
      %v1810 = vadd.f32 %v1666, %v1792
      %v1811 = vadd.f32 %v1669, %v1795
      %v1812 = vadd.f32 %v1674, %v1800
      %v1813 = vadd.f32 %v1677, %v1803
      %v1814 = vld [vmem:[#allocation3] sm:$0xff]
      %v1815 = vld [vmem:[#allocation3 + $0x8] sm:$0xff]
      %v1816 = vld [vmem:[#allocation3 + $0x10] sm:$0xff]
      %v1817 = vld [vmem:[#allocation3 + $0x18] sm:$0xff]
      %v1818 = vld [vmem:[#allocation3 + $0x20] sm:$0xff]
      %v1819 = vld [vmem:[#allocation3 + $0x28] sm:$0xff]
      %v1820 = vld [vmem:[#allocation3 + $0x30] sm:$0xff]
      %v1821 = vld [vmem:[#allocation3 + $0x38] sm:$0xff]
      %v1822 = vadd.f32 %v1814, %v1806
      %v1823 = vadd.f32 %v1815, %v1807
      %v1824 = vadd.f32 %v1816, %v1808
      %v1825 = vadd.f32 %v1817, %v1809
      %v1826 = vadd.f32 %v1818, %v1810
      %v1827 = vadd.f32 %v1819, %v1811
      %v1828 = vadd.f32 %v1820, %v1812
      %v1829 = vadd.f32 %v1821, %v1813
      %1830 = vst.msk [vmem:[#allocation3] sm:$0xff] %vm904, %v1822
      %1831 = vst.msk [vmem:[#allocation3 + $0x8] sm:$0xff] %vm904, %v1823
      %1832 = vst.msk [vmem:[#allocation3 + $0x10] sm:$0xff] %vm904, %v1824
      %1833 = vst.msk [vmem:[#allocation3 + $0x18] sm:$0xff] %vm904, %v1825
      %1834 = vst.msk [vmem:[#allocation3 + $0x20] sm:$0xff] %vm904, %v1826
      %1835 = vst.msk [vmem:[#allocation3 + $0x28] sm:$0xff] %vm904, %v1827
      %1836 = vst.msk [vmem:[#allocation3 + $0x30] sm:$0xff] %vm904, %v1828
      %1837 = vst.msk [vmem:[#allocation3 + $0x38] sm:$0xff] %vm904, %v1829
      %v1838 = vld [vmem:[#allocation3] sm:$0xff]
      %v1839 = vld [vmem:[#allocation3 + $0x8] sm:$0xff]
      %v1840 = vld [vmem:[#allocation3 + $0x10] sm:$0xff]
      %v1841 = vld [vmem:[#allocation3 + $0x18] sm:$0xff]
      %v1842 = vld [vmem:[#allocation3 + $0x20] sm:$0xff]
      %v1843 = vld [vmem:[#allocation3 + $0x28] sm:$0xff]
      %v1844 = vld [vmem:[#allocation3 + $0x30] sm:$0xff]
      %v1845 = vld [vmem:[#allocation3 + $0x38] sm:$0xff]
      %v1846 = vld [vmem:[%s4] sm:$0x1]
      %v1848 = vlaneseq
      %v1849 = vshrl.u32 %v1848, 7
      %v1850 = vsub.s32 0, %v1849
      %v1851 = vrot.slane %v1846, %v1850
      %v1853 = vadd.f32 %v1838, %v1851
      %v1854 = vadd.f32 %v1839, %v1851
      %v1855 = vadd.f32 %v1840, %v1851
      %v1856 = vadd.f32 %v1841, %v1851
      %v1857 = vadd.f32 %v1842, %v1851
      %v1858 = vadd.f32 %v1843, %v1851
      %v1859 = vadd.f32 %v1844, %v1851
      %v1860 = vadd.f32 %v1845, %v1851
      %vm1861 = vcmp.ge.f32.partialorder %v1853, 0.0
      %vm1862 = vcmp.ge.f32.partialorder %v1854, 0.0
      %vm1863 = vcmp.ge.f32.partialorder %v1855, 0.0
      %vm1864 = vcmp.ge.f32.partialorder %v1856, 0.0
      %vm1865 = vcmp.ge.f32.partialorder %v1857, 0.0
      %vm1866 = vcmp.ge.f32.partialorder %v1858, 0.0
      %vm1867 = vcmp.ge.f32.partialorder %v1859, 0.0
      %vm1868 = vcmp.ge.f32.partialorder %v1860, 0.0
      %v1869 = vmul.f32 %v1853, 0.1
      %v1870 = vmul.f32 %v1854, 0.1
      %v1871 = vmul.f32 %v1855, 0.1
      %v1872 = vmul.f32 %v1856, 0.1
      %v1873 = vmul.f32 %v1857, 0.1
      %v1874 = vmul.f32 %v1858, 0.1
      %v1875 = vmul.f32 %v1859, 0.1
      %v1876 = vmul.f32 %v1860, 0.1
      %v1877 = vsel %vm1861, %v1853, %v1869
      %v1878 = vsel %vm1862, %v1854, %v1870
      %v1879 = vsel %vm1863, %v1855, %v1871
      %v1880 = vsel %vm1864, %v1856, %v1872
      %v1881 = vsel %vm1865, %v1857, %v1873
      %v1882 = vsel %vm1866, %v1858, %v1874
      %v1883 = vsel %vm1867, %v1859, %v1875
      %v1884 = vsel %vm1868, %v1860, %v1876
      %vm1885 = vcmask 253952
      %vm1886 = vsmask.f32 256
      %vm1887 = vmand %vm1885, %vm1886
      %v1888 = vld [vmem:[%s401] sm:$0x1]
      %v1889 = vsel %vm1887, 0, %v1888
      %1890 = vst [vmem:[%s401] sm:$0x1] %v1889
      %v1891 = vld [vmem:[%s401 + $0xc] sm:$0x1]
      %v1892 = vsel %vm1887, 0, %v1891
      %1893 = vst [vmem:[%s401 + $0xc] sm:$0x1] %v1892
      %v1894 = vld [vmem:[%s401 + $0x18] sm:$0x1]
      %v1895 = vsel %vm1887, 0, %v1894
      %1896 = vst [vmem:[%s401 + $0x18] sm:$0x1] %v1895
      %v1897 = vld [vmem:[%s401 + $0x24] sm:$0x1]
      %v1898 = vsel %vm1887, 0, %v1897
      %1899 = vst [vmem:[%s401 + $0x24] sm:$0x1] %v1898
      %vm1900 = vsmask.f32 7938
      %vm1901 = vmand %vm1885, %vm1900
      %v1902 = vld [vmem:[%s401 + $0x8] sm:$0x1]
      %v1903 = vsel %vm1901, 0, %v1902
      %1904 = vst [vmem:[%s401 + $0x8] sm:$0x1] %v1903
      %v1905 = vld [vmem:[%s401 + $0x14] sm:$0x1]
      %v1906 = vsel %vm1901, 0, %v1905
      %1907 = vst [vmem:[%s401 + $0x14] sm:$0x1] %v1906
      %v1908 = vld [vmem:[%s401 + $0x20] sm:$0x1]
      %v1909 = vsel %vm1901, 0, %v1908
      %1910 = vst [vmem:[%s401 + $0x20] sm:$0x1] %v1909
      %v1911 = vld [vmem:[%s401 + $0x2c] sm:$0x1]
      %v1912 = vsel %vm1901, 0, %v1911
      %1913 = vst [vmem:[%s401 + $0x2c] sm:$0x1] %v1912
      %v1914 = vpack.c.bf16 %v1878, %v1877
      %v1915 = vpack.c.bf16 %v1880, %v1879
      %v1916 = vpack.c.bf16 %v1882, %v1881
      %v1917 = vpack.c.bf16 %v1884, %v1883
      %v1922 = vunpack.c.l.b16 %v1914
      %v1923 = vunpack.c.h.b16 %v1914
      %v1924 = vunpack.c.l.b16 %v1915
      %v1925 = vunpack.c.h.b16 %v1915
      %v1926 = vunpack.c.l.b16 %v1916
      %v1927 = vunpack.c.h.b16 %v1916
      %v1928 = vunpack.c.l.b16 %v1917
      %v1929 = vunpack.c.h.b16 %v1917
      %v1930 = vpack.c.b16 %v1922, %v1922
      %v1931 = vpack.c.b16 %v1923, %v1923
      %v1932 = vpack.c.b16 %v1924, %v1924
      %v1933 = vpack.c.b16 %v1925, %v1925
      %v1934 = vpack.c.b16 %v1926, %v1926
      %v1935 = vpack.c.b16 %v1927, %v1927
      %v1936 = vpack.c.b16 %v1928, %v1928
      %v1937 = vpack.c.b16 %v1929, %v1929
      %vm1938 = vsmask.f32 4368
      %vm1939 = vmor %vm1886, %vm1938
      %v1941 = vshrl.u32 %v1930, 16
      %v1943 = vrot.slane %v1941, 7
      %v1944 = vshll.u32 %v1930, 16
      %v1946 = vor.u32 %v1943, %v1944
      %v1947 = vrot.slane %v1943, 4
      %v1949 = vshrl.u32 %v1931, 16
      %v1951 = vrot.slane %v1949, 7
      %v1952 = vshll.u32 %v1931, 16
      %v1954 = vor.u32 %v1951, %v1952
      %v1955 = vsel %vm1939, %v1947, %v1954
      %v1956 = vrot.slane %v1951, 4
      %v1958 = vshrl.u32 %v1932, 16
      %v1960 = vrot.slane %v1958, 7
      %v1961 = vshll.u32 %v1932, 16
      %v1963 = vor.u32 %v1960, %v1961
      %v1964 = vrot.slane %v1960, 4
      %v1966 = vshrl.u32 %v1933, 16
      %v1968 = vrot.slane %v1966, 7
      %v1969 = vshll.u32 %v1933, 16
      %v1971 = vor.u32 %v1968, %v1969
      %v1972 = vsel %vm1939, %v1964, %v1971
      %v1973 = vrot.slane %v1968, 4
      %v1975 = vshrl.u32 %v1934, 16
      %v1977 = vrot.slane %v1975, 7
      %v1978 = vshll.u32 %v1934, 16
      %v1980 = vor.u32 %v1977, %v1978
      %v1981 = vrot.slane %v1977, 4
      %v1983 = vshrl.u32 %v1935, 16
      %v1985 = vrot.slane %v1983, 7
      %v1986 = vshll.u32 %v1935, 16
      %v1988 = vor.u32 %v1985, %v1986
      %v1989 = vsel %vm1939, %v1981, %v1988
      %v1990 = vrot.slane %v1985, 4
      %v1992 = vshrl.u32 %v1936, 16
      %v1994 = vrot.slane %v1992, 7
      %v1995 = vshll.u32 %v1936, 16
      %v1997 = vor.u32 %v1994, %v1995
      %v1998 = vrot.slane %v1994, 4
      %v2000 = vshrl.u32 %v1937, 16
      %v2002 = vrot.slane %v2000, 7
      %v2003 = vshll.u32 %v1937, 16
      %v2005 = vor.u32 %v2002, %v2003
      %v2006 = vsel %vm1939, %v1998, %v2005
      %v2007 = vrot.slane %v2002, 4
      %vm2020 = vcmask 257024
      %vm2021 = vmand %vm2020, %vm1900
      %v2022 = vld [vmem:[%s401] sm:$0xf]
      %v2023 = vsel %vm2021, %v1946, %v2022
      %2024 = vst [vmem:[%s401] sm:$0xf] %v2023
      %vm2025 = vcmask 257024
      %2026 = vst.msk [vmem:[%s401 + $0x4] sm:$0xf] %vm2025, %v1955
      %v2027 = vld [vmem:[%s401 + $0x8] sm:$0x1]
      %v2028 = vsel %vm1887, %v1956, %v2027
      %2029 = vst [vmem:[%s401 + $0x8] sm:$0x1] %v2028
      %v2030 = vld [vmem:[%s401 + $0xc] sm:$0xf]
      %v2031 = vsel %vm2021, %v1963, %v2030
      %2032 = vst [vmem:[%s401 + $0xc] sm:$0xf] %v2031
      %2033 = vst.msk [vmem:[%s401 + $0x10] sm:$0xf] %vm2025, %v1972
      %v2034 = vld [vmem:[%s401 + $0x14] sm:$0x1]
      %v2035 = vsel %vm1887, %v1973, %v2034
      %2036 = vst [vmem:[%s401 + $0x14] sm:$0x1] %v2035
      %v2037 = vld [vmem:[%s401 + $0x18] sm:$0xf]
      %v2038 = vsel %vm2021, %v1980, %v2037
      %2039 = vst [vmem:[%s401 + $0x18] sm:$0xf] %v2038
      %2040 = vst.msk [vmem:[%s401 + $0x1c] sm:$0xf] %vm2025, %v1989
      %v2041 = vld [vmem:[%s401 + $0x20] sm:$0x1]
      %v2042 = vsel %vm1887, %v1990, %v2041
      %2043 = vst [vmem:[%s401 + $0x20] sm:$0x1] %v2042
      %v2044 = vld [vmem:[%s401 + $0x24] sm:$0xf]
      %v2045 = vsel %vm2021, %v1997, %v2044
      %2046 = vst [vmem:[%s401 + $0x24] sm:$0xf] %v2045
      %2047 = vst.msk [vmem:[%s401 + $0x28] sm:$0xf] %vm2025, %v2006
      %v2048 = vld [vmem:[%s401 + $0x2c] sm:$0x1]
      %v2049 = vsel %vm1887, %v2007, %v2048
      %2050 = vst [vmem:[%s401 + $0x2c] sm:$0x1] %v2049
      %s2051 = smul.u32 4, %s21
      %p2052 = scmp.lt.s32.totalorder %s20, 1
      %s2053 = scalar_select %p2052, %s20, 1
      %p2054 = scmp.lt.s32.totalorder %s2051, 15
      %s2055 = scalar_select %p2054, %s2051, 15
      %s2056 = smul.addr %s2055, 3
      %s2057 = smul.addr %s2053, 48
      %s2058 = sadd.s32 %s2056, %s2057
      %s2059 = smul.addr %s2058, 4
      %s2060 = scalar_lea.vmem %s5, %s2059
      // Predicated region
      $region49: #{tpu_custom_call.1} parent=39 // pred_check
        %p2061 = pneg %p190
      $region50: #{tpu_custom_call.1} parent=39 // pred_check_branch
        %2063 = sbr.rel (%p2061) target = $region52
      $region51: #{tpu_custom_call.1} parent=39 // pred_region
        %s2064 = smul.u32 4, %s21
      $region52: #{tpu_custom_call.1} parent=39 // pred_fallthru
        _
    $region40: #{tpu_custom_call.1} parent=5 // pred_fallthru
      _
    %p2065 = scmp.le.s32.totalorder 2, %s11
    // Predicated region
    $region53: #{tpu_custom_call.1} parent=5 // pred_check
      %p2066 = pneg %p2065
    $region54: #{tpu_custom_call.1} parent=5 // pred_check_branch
      %2068 = sbr.rel (%p2066) target = $region56
    $region55: #{tpu_custom_call.1} parent=5 // pred_region
      %s2069 = ssub.s32 %s11, 2
      // Predicated region
      $region57: #{tpu_custom_call.1} parent=55 // pred_check
        %p2070 = pneg %p196
      $region58: #{tpu_custom_call.1} parent=55 // pred_check_branch
        %2072 = sbr.rel (%p2070) target = $region60
      $region59: #{tpu_custom_call.1} parent=55 // pred_region
        %s2073 = smul.u32 4, %s23
        %p2074 = scmp.lt.s32.totalorder %s22, 1
        %s2075 = scalar_select %p2074, %s22, 1
        %p2076 = scmp.lt.s32.totalorder %s2073, 15
        %s2077 = scalar_select %p2076, %s2073, 15
        %s2078 = smul.addr %s2077, 3
        %s2079 = smul.addr %s2075, 48
        %s2080 = sadd.s32 %s2078, %s2079
        %s2081 = smul.addr %s2080, 4
        %s2082 = scalar_lea.vmem %s5, %s2081
      $region60: #{tpu_custom_call.1} parent=55 // pred_fallthru
        _
    $region56: #{tpu_custom_call.1} parent=5 // pred_fallthru
      _
  $region6: #{tpu_custom_call.1} parent=0 // loop_footer
    %s15 = sadd.s32 1, %s11
  $region7: #{tpu_custom_call.1} parent=0 // loop_footer_branch
    %10 = sbr.rel target = $region3
  $region8: #{tpu_custom_call.1} parent=0 // loop_exit
    _

</llo_original>
